<compile_context>
chip_gen: v7x
topology: tpu7x:2x2x1
jax: 0.10.0
libtpu: 0.0.40
codegen_flags: <defaults>
</compile_context>

<pallas_src>
import functools

import jax
import jax.numpy as jnp
from jax.experimental import pallas as pl
from jax.experimental.pallas import tpu as pltpu


def _graph_attention_kernel(xc_ref, xn_ref, w2_ref, p_ref, o_ref, *,
                            chunk_n, num_nodes):
    """One (batch, node-block) grid step.

    xc_ref: (1, D, TNB)     center features            (D on sublanes, nodes on lanes)
    xn_ref: (1, K*D, TNB)   neighbor features, k-major (row k*D+d <-> neighbor k, chan d)
    w2_ref: (K, K*D)        block-diagonal folded weight (row k holds v2 in cols k*D..)
    p_ref : (D, 2)          col 0 = v1, col 1 = scalar bias c (replicated)
    o_ref : (1, D, TNB)
    """
    _, d, tnb = xc_ref.shape
    k = xn_ref.shape[1] // d

    # small params, hoisted out of the chunk loop
    w2 = w2_ref[...]                          # (K, K*D) f32
    v1 = p_ref[:, 0:1]                        # (D, 1)   f32
    c = p_ref[0:1, 1:2]                       # (1, 1)   f32

    ragged = (num_nodes % tnb) != 0

    off = 0
    while off < tnb:                          # static python loop over lane chunks
        sz = min(chunk_n, tnb - off)
        nsl = pl.ds(off, sz)

        # --- scores -------------------------------------------------------------
        # all K neighbor scores in one MXU matmul: (K, K*D) @ (K*D, sz) -> (K, sz)
        xn_c = xn_ref[0, :, nsl].astype(jnp.float32)
        s = jnp.dot(w2, xn_c, precision=jax.lax.Precision.HIGHEST,
                    preferred_element_type=jnp.float32)            # (K, sz)

        # center contribution (shared by all K): VPU mul + one sublane reduce
        xc_c = xc_ref[0, :, nsl].astype(jnp.float32)               # (D, sz)
        s = s + (jnp.sum(xc_c * v1, axis=0, keepdims=True) + c)    # (K, sz)

        s = jnp.where(s > 0.0, s, 0.1 * s)                         # LeakyReLU(0.1)

        if ragged:
            # last node block reads past N: garbage stays lane-local, but zero the
            # padded lanes' scores so exp() cannot produce inf/NaN.
            node = (off + pl.program_id(1) * tnb
                    + jax.lax.broadcasted_iota(jnp.int32, (1, sz), 1))
            s = jnp.where(node < num_nodes, s, 0.0)

        # --- softmax over the K neighbors (K lives on sublanes) ------------------
        m = jnp.max(s, axis=0, keepdims=True)                      # (1, sz)  XLU
        e = jnp.exp(s - m)                                         # (K, sz)  EUP
        denom = jnp.sum(e, axis=0, keepdims=True)                  # (1, sz)  XLU
        p = e * pl.reciprocal(denom, approx=True)                  # (K, sz)

        # --- attention-weighted sum over neighbors (pure VPU, xn re-read from VMEM)
        acc = p[0:1, :] * xn_ref[0, pl.ds(0, d), nsl].astype(jnp.float32)
        for kk in range(1, k):
            acc = acc + p[kk:kk + 1, :] * xn_ref[0, pl.ds(kk * d, d), nsl].astype(jnp.float32)

        o_ref[0, :, nsl] = acc.astype(o_ref.dtype)                 # lane-dense store
        off += sz


def graph_attention_pallas(x, x_n, we, be, wa, ba, *,
                           tile_n=8192, chunk_n=1024, neighbor_buffers=3):
    """x: (B, D, N, 1), x_n: (B, D, N, K) -> (B, D, N, 1), matching the PyTorch module."""
    B, D, N, _ = x.shape
    K = x_n.shape[3]
    E = we.shape[0]
    out_dtype = jnp.result_type(x.dtype, x_n.dtype)

    # ---- exact fold of the embedding Linear into the attention Linear ----
    wef = we.astype(jnp.float32)
    bef = be.astype(jnp.float32)
    wa1 = wa[0, :E].astype(jnp.float32)
    wa2 = wa[0, E:].astype(jnp.float32)
    v1 = wef.T @ wa1                                                   # (D,)
    v2 = wef.T @ wa2                                                   # (D,)
    c = jnp.dot(bef, wa1) + jnp.dot(bef, wa2) + ba[0].astype(jnp.float32)
    # block-diagonal MXU lhs: row k holds v2 at columns [k*D, (k+1)*D)
    w2blk = jnp.kron(jnp.eye(K, dtype=jnp.float32), v2[None, :])       # (K, K*D)
    params = jnp.stack([v1, jnp.full((D,), c, jnp.float32)], axis=1)   # (D, 2)

    # ---- input views: no pad, no cast ----
    xc = x.reshape(B, D, N)                                            # free squeeze
    # TODO(synk): the only remaining HBM copy of x_n; removing it needs a K-major
    # producer layout or an interleaved-lane kernel (K-group segmented softmax).
    xnf = jnp.transpose(x_n, (0, 3, 1, 2)).reshape(B, K * D, N)        # (B, K*D, N)

    # ---- tiling ----
    tile_n = max(128, (tile_n // 128) * 128)
    tnb = N if N <= tile_n else tile_n
    grid_n = pl.cdiv(N, tnb)
    if B * grid_n < 2 and N > 128:
        # keep >= 2 grid steps so megacore / v7x 2-TC sharding stays possible
        tnb = max(128, ((N + 255) // 256) * 128)
        grid_n = pl.cdiv(N, tnb)
    tnc = min(chunk_n, tnb)

    itemsize = jnp.dtype(x_n.dtype).itemsize
    nbuf = neighbor_buffers if (neighbor_buffers or 0) > 2 else 2
    vmem_need = (K * D * tnb * itemsize) * nbuf \
        + 2 * D * tnb * (itemsize + jnp.dtype(out_dtype).itemsize) \
        + 4 * (K * K * D + 2 * D)
    vmem_limit = int(min(48 << 20, max(32 << 20, 2 * vmem_need)))

    kernel = functools.partial(_graph_attention_kernel, chunk_n=tnc, num_nodes=N)

    def build(buffers):
        xn_kwargs = dict(pipeline_mode=pl.Buffered(buffers)) if buffers and buffers > 2 else {}
        return pl.pallas_call(
            kernel,
            out_shape=jax.ShapeDtypeStruct((B, D, N), out_dtype),
            grid_spec=pltpu.PrefetchScalarGridSpec(
                num_scalar_prefetch=0,
                grid=(B, grid_n),
                in_specs=[
                    pl.BlockSpec((1, D, tnb), lambda b, t: (b, 0, t)),          # x center
                    pl.BlockSpec((1, K * D, tnb), lambda b, t: (b, 0, t),       # x neighbors
                                 **xn_kwargs),
                    pl.BlockSpec((K, K * D), lambda b, t: (0, 0)),              # folded v2 (MXU lhs)
                    pl.BlockSpec((D, 2), lambda b, t: (0, 0)),                  # v1, c
                ],
                out_specs=pl.BlockSpec((1, D, tnb), lambda b, t: (b, 0, t)),
            ),
            compiler_params=pltpu.CompilerParams(
                dimension_semantics=("parallel", "parallel"),
                vmem_limit_bytes=vmem_limit,
            ),
        )

    try:
        out = jax.block_until_ready(build(neighbor_buffers)(xc, xnf, w2blk, params))
    except Exception:  # fall back to default double-buffering if Buffered(n) unsupported
        out = jax.block_until_ready(build(None)(xc, xnf, w2blk, params))

    return out.reshape(B, D, N, 1)


def graph_attention_ref(x, x_n, we, be, wa, ba, k):
    """Pure-JAX transcription of the PyTorch forward (un-folded), for verification."""
    xr = jnp.tile(x, (1, 1, 1, k))                 # repeat(1,1,1,k)
    xr = jnp.transpose(xr, (0, 2, 3, 1))           # b d x y -> b x y d
    xn = jnp.transpose(x_n, (0, 2, 3, 1))
    e = xr @ we.T + be
    e_n = xn @ we.T + be
    ecat = jnp.concatenate([e, e_n], axis=3)
    attn = ecat @ wa.T + ba
    attn = jnp.where(attn > 0, attn, 0.1 * attn)   # LeakyReLU(0.1)
    attn = jax.nn.softmax(attn, axis=2)
    out = jnp.sum(xn * attn, axis=2)               # (B, N, D)
    return jnp.transpose(out, (0, 2, 1))[..., None]


if __name__ == "__main__":
    # shapes consistent with the module: dim=8, embed_dim=16, k=8
    B, D, N, K, E = 2, 8, 384, 8, 16

    key = jax.random.PRNGKey(0)
    kx, kxn, kw1, kb1, kw2, kb2 = jax.random.split(key, 6)

    x = jax.random.normal(kx, (B, D, N, 1), dtype=jnp.float32)
    x_n = jax.random.normal(kxn, (B, D, N, K), dtype=jnp.float32)

    # deterministic parameter init (PyTorch Linear default: U(+-1/sqrt(fan_in)))
    lim_e = 1.0 / (D ** 0.5)
    we = jax.random.uniform(kw1, (E, D), jnp.float32, -lim_e, lim_e)      # embedding.weight
    be = jax.random.uniform(kb1, (E,), jnp.float32, -lim_e, lim_e)        # embedding.bias
    lim_a = 1.0 / ((2 * E) ** 0.5)
    wa = jax.random.uniform(kw2, (1, 2 * E), jnp.float32, -lim_a, lim_a)  # attention.weight
    ba = jax.random.uniform(kb2, (1,), jnp.float32, -lim_a, lim_a)        # attention.bias

    # small tiles so the (B, N/TNB) grid, the in-kernel chunk loop and the ragged
    # last node block (384 % 256 != 0, handled without any jnp.pad) are all exercised
    out = graph_attention_pallas(x, x_n, we, be, wa, ba, tile_n=256, chunk_n=128)
    out = jax.block_until_ready(out)

    ref = graph_attention_ref(x, x_n, we, be, wa, ba, K)
    assert out.shape == (B, D, N, 1), out.shape
    err = float(jnp.max(jnp.abs(out - ref)))
    # tolerance covers the EUP approx-reciprocal in the softmax normalization
    assert err < 1e-2, err

    print("KERNEL_OK")
</pallas_src>

<mosaic_0001>
module attributes {stable_mosaic.version = 11 : i64} {
  func.func @_graph_attention_kernel(%arg0: i32, %arg1: i32, %arg2: memref<1x8x256xf32, #tpu.memory_space<vmem>>, %arg3: memref<1x64x256xf32, #tpu.memory_space<vmem>>, %arg4: memref<8x64xf32, #tpu.memory_space<vmem>>, %arg5: memref<8x2xf32, #tpu.memory_space<vmem>>, %arg6: memref<1x8x256xf32, #tpu.memory_space<vmem>>) attributes {dimension_semantics = [#tpu.dimension_semantics<parallel>, #tpu.dimension_semantics<parallel>], iteration_bounds = array<i64: 2, 2>, scalar_prefetch = 0 : i64, scratch_operands = 0 : i64, tpu.core_type = #tpu.core_type<tc>, window_params = [{transform_indices = @transform_0, window_bounds = array<i64: 1, 8, 256>}, {transform_indices = @transform_1, window_bounds = array<i64: 1, 64, 256>}, {pipeline_mode = #tpu.pipeline_mode<synchronous>, transform_indices = @transform_2, window_bounds = array<i64: 8, 64>}, {pipeline_mode = #tpu.pipeline_mode<synchronous>, transform_indices = @transform_3, window_bounds = array<i64: 8, 2>}, {transform_indices = @transform_4, window_bounds = array<i64: 1, 8, 256>}]} {
    %c0 = arith.constant 0 : index
    %c0_0 = arith.constant 0 : index
    %0 = vector.load %arg4[%c0, %c0_0] : memref<8x64xf32, #tpu.memory_space<vmem>>, vector<8x64xf32>
    %c0_1 = arith.constant 0 : index
    %c0_2 = arith.constant 0 : index
    %1 = vector.load %arg5[%c0_1, %c0_2] : memref<8x2xf32, #tpu.memory_space<vmem>>, vector<8x1xf32>
    %c0_3 = arith.constant 0 : index
    %c1 = arith.constant 1 : index
    %2 = vector.load %arg5[%c0_3, %c1] : memref<8x2xf32, #tpu.memory_space<vmem>>, vector<1x1xf32>
    %c0_4 = arith.constant 0 : index
    %c0_5 = arith.constant 0 : index
    %c0_6 = arith.constant 0 : index
    %3 = vector.load %arg3[%c0_4, %c0_5, %c0_6] : memref<1x64x256xf32, #tpu.memory_space<vmem>>, vector<1x64x128xf32>
    %4 = vector.shape_cast %3 : vector<1x64x128xf32> to vector<64x128xf32>
    %cst = arith.constant dense<0.000000e+00> : vector<8x128xf32>
    %5 = tpu.matmul %0, %4, %cst {dimension_numbers = #tpu.dot_dimension_numbers<[1], [0], [0], [1], [0, 0, 1, 1], [], []>, precision = #tpu.contract_precision<fp32>} : vector<8x64xf32>, vector<64x128xf32>, vector<8x128xf32> -> vector<8x128xf32>
    %c0_7 = arith.constant 0 : index
    %c0_8 = arith.constant 0 : index
    %c0_9 = arith.constant 0 : index
    %6 = vector.load %arg2[%c0_7, %c0_8, %c0_9] : memref<1x8x256xf32, #tpu.memory_space<vmem>>, vector<1x8x128xf32>
    %7 = vector.shape_cast %6 : vector<1x8x128xf32> to vector<8x128xf32>
    %8 = vector.broadcast %1 : vector<8x1xf32> to vector<8x128xf32>
    %9 = arith.mulf %7, %8 : vector<8x128xf32>
    %cst_10 = arith.constant dense<0.000000e+00> : vector<128xf32>
    %10 = vector.multi_reduction <add>, %9, %cst_10 [0] : vector<8x128xf32> to vector<128xf32>
    %11 = vector.shape_cast %10 : vector<128xf32> to vector<1x128xf32>
    %12 = vector.broadcast %2 : vector<1x1xf32> to vector<1x128xf32>
    %13 = arith.addf %11, %12 : vector<1x128xf32>
    %14 = vector.broadcast %13 : vector<1x128xf32> to vector<8x128xf32>
    %15 = arith.addf %5, %14 : vector<8x128xf32>
    %cst_11 = arith.constant 0.000000e+00 : f32
    %16 = vector.broadcast %cst_11 : f32 to vector<8x128xf32>
    %17 = arith.cmpf ogt, %15, %16 : vector<8x128xf32>
    %cst_12 = arith.constant 1.000000e-01 : f32
    %18 = vector.broadcast %cst_12 : f32 to vector<8x128xf32>
    %19 = arith.mulf %18, %15 : vector<8x128xf32>
    %20 = arith.select %17, %15, %19 : vector<8x128xi1>, vector<8x128xf32>
    %c256_i32 = arith.constant 256 : i32
    %21 = arith.muli %arg1, %c256_i32 : i32
    %c0_i32 = arith.constant 0 : i32
    %22 = arith.addi %c0_i32, %21 : i32
    %23 = tpu.iota {dimensions = array<i32: 1>} : vector<1x128xi32>
    %24 = vector.broadcast %22 : i32 to vector<1x128xi32>
    %25 = arith.addi %24, %23 : vector<1x128xi32>
    %c384_i32 = arith.constant 384 : i32
    %26 = vector.broadcast %c384_i32 : i32 to vector<1x128xi32>
    %27 = arith.cmpi slt, %25, %26 : vector<1x128xi32>
    %cst_13 = arith.constant 0.000000e+00 : f32
    %28 = vector.shape_cast %27 : vector<1x128xi1> to vector<1x128xi1>
    %29 = vector.broadcast %28 : vector<1x128xi1> to vector<8x128xi1>
    %30 = vector.broadcast %cst_13 : f32 to vector<8x128xf32>
    %31 = arith.select %29, %20, %30 : vector<8x128xi1>, vector<8x128xf32>
    %cst_14 = arith.constant dense<0xFF800000> : vector<128xf32>
    %32 = vector.multi_reduction <maximumf>, %31, %cst_14 [0] : vector<8x128xf32> to vector<128xf32>
    %33 = vector.shape_cast %32 : vector<128xf32> to vector<1x128xf32>
    %34 = vector.broadcast %33 : vector<1x128xf32> to vector<8x128xf32>
    %35 = arith.subf %31, %34 : vector<8x128xf32>
    %36 = math.exp %35 : vector<8x128xf32>
    %cst_15 = arith.constant dense<0.000000e+00> : vector<128xf32>
    %37 = vector.multi_reduction <add>, %36, %cst_15 [0] : vector<8x128xf32> to vector<128xf32>
    %38 = vector.shape_cast %37 : vector<128xf32> to vector<1x128xf32>
    %39 = tpu.reciprocal %38 {approx = true} : vector<1x128xf32> -> vector<1x128xf32>
    %40 = vector.broadcast %39 : vector<1x128xf32> to vector<8x128xf32>
    %41 = arith.mulf %36, %40 : vector<8x128xf32>
    %42 = vector.extract_strided_slice %41 {offsets = [0, 0], sizes = [1, 128], strides = [1, 1]} : vector<8x128xf32> to vector<1x128xf32>
    %c0_16 = arith.constant 0 : index
    %c0_17 = arith.constant 0 : index
    %c0_18 = arith.constant 0 : index
    %43 = vector.load %arg3[%c0_16, %c0_17, %c0_18] : memref<1x64x256xf32, #tpu.memory_space<vmem>>, vector<1x8x128xf32>
    %44 = vector.shape_cast %43 : vector<1x8x128xf32> to vector<8x128xf32>
    %45 = vector.broadcast %42 : vector<1x128xf32> to vector<8x128xf32>
    %46 = arith.mulf %45, %44 : vector<8x128xf32>
    %47 = vector.extract_strided_slice %41 {offsets = [1, 0], sizes = [1, 128], strides = [1, 1]} : vector<8x128xf32> to vector<1x128xf32>
    %c0_19 = arith.constant 0 : index
    %c8 = arith.constant 8 : index
    %c0_20 = arith.constant 0 : index
    %48 = vector.load %arg3[%c0_19, %c8, %c0_20] : memref<1x64x256xf32, #tpu.memory_space<vmem>>, vector<1x8x128xf32>
    %49 = vector.shape_cast %48 : vector<1x8x128xf32> to vector<8x128xf32>
    %50 = vector.broadcast %47 : vector<1x128xf32> to vector<8x128xf32>
    %51 = arith.mulf %50, %49 : vector<8x128xf32>
    %52 = arith.addf %46, %51 : vector<8x128xf32>
    %53 = vector.extract_strided_slice %41 {offsets = [2, 0], sizes = [1, 128], strides = [1, 1]} : vector<8x128xf32> to vector<1x128xf32>
    %c0_21 = arith.constant 0 : index
    %c16 = arith.constant 16 : index
    %c0_22 = arith.constant 0 : index
    %54 = vector.load %arg3[%c0_21, %c16, %c0_22] : memref<1x64x256xf32, #tpu.memory_space<vmem>>, vector<1x8x128xf32>
    %55 = vector.shape_cast %54 : vector<1x8x128xf32> to vector<8x128xf32>
    %56 = vector.broadcast %53 : vector<1x128xf32> to vector<8x128xf32>
    %57 = arith.mulf %56, %55 : vector<8x128xf32>
    %58 = arith.addf %52, %57 : vector<8x128xf32>
    %59 = vector.extract_strided_slice %41 {offsets = [3, 0], sizes = [1, 128], strides = [1, 1]} : vector<8x128xf32> to vector<1x128xf32>
    %c0_23 = arith.constant 0 : index
    %c24 = arith.constant 24 : index
    %c0_24 = arith.constant 0 : index
    %60 = vector.load %arg3[%c0_23, %c24, %c0_24] : memref<1x64x256xf32, #tpu.memory_space<vmem>>, vector<1x8x128xf32>
    %61 = vector.shape_cast %60 : vector<1x8x128xf32> to vector<8x128xf32>
    %62 = vector.broadcast %59 : vector<1x128xf32> to vector<8x128xf32>
    %63 = arith.mulf %62, %61 : vector<8x128xf32>
    %64 = arith.addf %58, %63 : vector<8x128xf32>
    %65 = vector.extract_strided_slice %41 {offsets = [4, 0], sizes = [1, 128], strides = [1, 1]} : vector<8x128xf32> to vector<1x128xf32>
    %c0_25 = arith.constant 0 : index
    %c32 = arith.constant 32 : index
    %c0_26 = arith.constant 0 : index
    %66 = vector.load %arg3[%c0_25, %c32, %c0_26] : memref<1x64x256xf32, #tpu.memory_space<vmem>>, vector<1x8x128xf32>
    %67 = vector.shape_cast %66 : vector<1x8x128xf32> to vector<8x128xf32>
    %68 = vector.broadcast %65 : vector<1x128xf32> to vector<8x128xf32>
    %69 = arith.mulf %68, %67 : vector<8x128xf32>
    %70 = arith.addf %64, %69 : vector<8x128xf32>
    %71 = vector.extract_strided_slice %41 {offsets = [5, 0], sizes = [1, 128], strides = [1, 1]} : vector<8x128xf32> to vector<1x128xf32>
    %c0_27 = arith.constant 0 : index
    %c40 = arith.constant 40 : index
    %c0_28 = arith.constant 0 : index
    %72 = vector.load %arg3[%c0_27, %c40, %c0_28] : memref<1x64x256xf32, #tpu.memory_space<vmem>>, vector<1x8x128xf32>
    %73 = vector.shape_cast %72 : vector<1x8x128xf32> to vector<8x128xf32>
    %74 = vector.broadcast %71 : vector<1x128xf32> to vector<8x128xf32>
    %75 = arith.mulf %74, %73 : vector<8x128xf32>
    %76 = arith.addf %70, %75 : vector<8x128xf32>
    %77 = vector.extract_strided_slice %41 {offsets = [6, 0], sizes = [1, 128], strides = [1, 1]} : vector<8x128xf32> to vector<1x128xf32>
    %c0_29 = arith.constant 0 : index
    %c48 = arith.constant 48 : index
    %c0_30 = arith.constant 0 : index
    %78 = vector.load %arg3[%c0_29, %c48, %c0_30] : memref<1x64x256xf32, #tpu.memory_space<vmem>>, vector<1x8x128xf32>
    %79 = vector.shape_cast %78 : vector<1x8x128xf32> to vector<8x128xf32>
    %80 = vector.broadcast %77 : vector<1x128xf32> to vector<8x128xf32>
    %81 = arith.mulf %80, %79 : vector<8x128xf32>
    %82 = arith.addf %76, %81 : vector<8x128xf32>
    %83 = vector.extract_strided_slice %41 {offsets = [7, 0], sizes = [1, 128], strides = [1, 1]} : vector<8x128xf32> to vector<1x128xf32>
    %c0_31 = arith.constant 0 : index
    %c56 = arith.constant 56 : index
    %c0_32 = arith.constant 0 : index
    %84 = vector.load %arg3[%c0_31, %c56, %c0_32] : memref<1x64x256xf32, #tpu.memory_space<vmem>>, vector<1x8x128xf32>
    %85 = vector.shape_cast %84 : vector<1x8x128xf32> to vector<8x128xf32>
    %86 = vector.broadcast %83 : vector<1x128xf32> to vector<8x128xf32>
    %87 = arith.mulf %86, %85 : vector<8x128xf32>
    %88 = arith.addf %82, %87 : vector<8x128xf32>
    %c0_33 = arith.constant 0 : index
    %c0_34 = arith.constant 0 : index
    %c0_35 = arith.constant 0 : index
    %89 = vector.load %arg6[%c0_33, %c0_34, %c0_35] : memref<1x8x256xf32, #tpu.memory_space<vmem>>, vector<1x8x128xf32>
    %90 = vector.shape_cast %89 : vector<1x8x128xf32> to vector<8x128xf32>
    %91 = vector.shape_cast %88 : vector<8x128xf32> to vector<1x8x128xf32>
    tpu.vector_store %arg6[%c0_33, %c0_34, %c0_35], %91 {strides = array<i32>} : memref<1x8x256xf32, #tpu.memory_space<vmem>>, vector<1x8x128xf32>,
    %c0_36 = arith.constant 0 : index
    %c0_37 = arith.constant 0 : index
    %c128 = arith.constant 128 : index
    %92 = vector.load %arg3[%c0_36, %c0_37, %c128] : memref<1x64x256xf32, #tpu.memory_space<vmem>>, vector<1x64x128xf32>
    %93 = vector.shape_cast %92 : vector<1x64x128xf32> to vector<64x128xf32>
    %cst_38 = arith.constant dense<0.000000e+00> : vector<8x128xf32>
    %94 = tpu.matmul %0, %93, %cst_38 {dimension_numbers = #tpu.dot_dimension_numbers<[1], [0], [0], [1], [0, 0, 1, 1], [], []>, precision = #tpu.contract_precision<fp32>} : vector<8x64xf32>, vector<64x128xf32>, vector<8x128xf32> -> vector<8x128xf32>
    %c0_39 = arith.constant 0 : index
    %c0_40 = arith.constant 0 : index
    %c128_41 = arith.constant 128 : index
    %95 = vector.load %arg2[%c0_39, %c0_40, %c128_41] : memref<1x8x256xf32, #tpu.memory_space<vmem>>, vector<1x8x128xf32>
    %96 = vector.shape_cast %95 : vector<1x8x128xf32> to vector<8x128xf32>
    %97 = vector.broadcast %1 : vector<8x1xf32> to vector<8x128xf32>
    %98 = arith.mulf %96, %97 : vector<8x128xf32>
    %cst_42 = arith.constant dense<0.000000e+00> : vector<128xf32>
    %99 = vector.multi_reduction <add>, %98, %cst_42 [0] : vector<8x128xf32> to vector<128xf32>
    %100 = vector.shape_cast %99 : vector<128xf32> to vector<1x128xf32>
    %101 = vector.broadcast %2 : vector<1x1xf32> to vector<1x128xf32>
    %102 = arith.addf %100, %101 : vector<1x128xf32>
    %103 = vector.broadcast %102 : vector<1x128xf32> to vector<8x128xf32>
    %104 = arith.addf %94, %103 : vector<8x128xf32>
    %cst_43 = arith.constant 0.000000e+00 : f32
    %105 = vector.broadcast %cst_43 : f32 to vector<8x128xf32>
    %106 = arith.cmpf ogt, %104, %105 : vector<8x128xf32>
    %cst_44 = arith.constant 1.000000e-01 : f32
    %107 = vector.broadcast %cst_44 : f32 to vector<8x128xf32>
    %108 = arith.mulf %107, %104 : vector<8x128xf32>
    %109 = arith.select %106, %104, %108 : vector<8x128xi1>, vector<8x128xf32>
    %c256_i32_45 = arith.constant 256 : i32
    %110 = arith.muli %arg1, %c256_i32_45 : i32
    %c128_i32 = arith.constant 128 : i32
    %111 = arith.addi %c128_i32, %110 : i32
    %112 = tpu.iota {dimensions = array<i32: 1>} : vector<1x128xi32>
    %113 = vector.broadcast %111 : i32 to vector<1x128xi32>
    %114 = arith.addi %113, %112 : vector<1x128xi32>
    %c384_i32_46 = arith.constant 384 : i32
    %115 = vector.broadcast %c384_i32_46 : i32 to vector<1x128xi32>
    %116 = arith.cmpi slt, %114, %115 : vector<1x128xi32>
    %cst_47 = arith.constant 0.000000e+00 : f32
    %117 = vector.shape_cast %116 : vector<1x128xi1> to vector<1x128xi1>
    %118 = vector.broadcast %117 : vector<1x128xi1> to vector<8x128xi1>
    %119 = vector.broadcast %cst_47 : f32 to vector<8x128xf32>
    %120 = arith.select %118, %109, %119 : vector<8x128xi1>, vector<8x128xf32>
    %cst_48 = arith.constant dense<0xFF800000> : vector<128xf32>
    %121 = vector.multi_reduction <maximumf>, %120, %cst_48 [0] : vector<8x128xf32> to vector<128xf32>
    %122 = vector.shape_cast %121 : vector<128xf32> to vector<1x128xf32>
    %123 = vector.broadcast %122 : vector<1x128xf32> to vector<8x128xf32>
    %124 = arith.subf %120, %123 : vector<8x128xf32>
    %125 = math.exp %124 : vector<8x128xf32>
    %cst_49 = arith.constant dense<0.000000e+00> : vector<128xf32>
    %126 = vector.multi_reduction <add>, %125, %cst_49 [0] : vector<8x128xf32> to vector<128xf32>
    %127 = vector.shape_cast %126 : vector<128xf32> to vector<1x128xf32>
    %128 = tpu.reciprocal %127 {approx = true} : vector<1x128xf32> -> vector<1x128xf32>
    %129 = vector.broadcast %128 : vector<1x128xf32> to vector<8x128xf32>
    %130 = arith.mulf %125, %129 : vector<8x128xf32>
    %131 = vector.extract_strided_slice %130 {offsets = [0, 0], sizes = [1, 128], strides = [1, 1]} : vector<8x128xf32> to vector<1x128xf32>
    %c0_50 = arith.constant 0 : index
    %c0_51 = arith.constant 0 : index
    %c128_52 = arith.constant 128 : index
    %132 = vector.load %arg3[%c0_50, %c0_51, %c128_52] : memref<1x64x256xf32, #tpu.memory_space<vmem>>, vector<1x8x128xf32>
    %133 = vector.shape_cast %132 : vector<1x8x128xf32> to vector<8x128xf32>
    %134 = vector.broadcast %131 : vector<1x128xf32> to vector<8x128xf32>
    %135 = arith.mulf %134, %133 : vector<8x128xf32>
    %136 = vector.extract_strided_slice %130 {offsets = [1, 0], sizes = [1, 128], strides = [1, 1]} : vector<8x128xf32> to vector<1x128xf32>
    %c0_53 = arith.constant 0 : index
    %c8_54 = arith.constant 8 : index
    %c128_55 = arith.constant 128 : index
    %137 = vector.load %arg3[%c0_53, %c8_54, %c128_55] : memref<1x64x256xf32, #tpu.memory_space<vmem>>, vector<1x8x128xf32>
    %138 = vector.shape_cast %137 : vector<1x8x128xf32> to vector<8x128xf32>
    %139 = vector.broadcast %136 : vector<1x128xf32> to vector<8x128xf32>
    %140 = arith.mulf %139, %138 : vector<8x128xf32>
    %141 = arith.addf %135, %140 : vector<8x128xf32>
    %142 = vector.extract_strided_slice %130 {offsets = [2, 0], sizes = [1, 128], strides = [1, 1]} : vector<8x128xf32> to vector<1x128xf32>
    %c0_56 = arith.constant 0 : index
    %c16_57 = arith.constant 16 : index
    %c128_58 = arith.constant 128 : index
    %143 = vector.load %arg3[%c0_56, %c16_57, %c128_58] : memref<1x64x256xf32, #tpu.memory_space<vmem>>, vector<1x8x128xf32>
    %144 = vector.shape_cast %143 : vector<1x8x128xf32> to vector<8x128xf32>
    %145 = vector.broadcast %142 : vector<1x128xf32> to vector<8x128xf32>
    %146 = arith.mulf %145, %144 : vector<8x128xf32>
    %147 = arith.addf %141, %146 : vector<8x128xf32>
    %148 = vector.extract_strided_slice %130 {offsets = [3, 0], sizes = [1, 128], strides = [1, 1]} : vector<8x128xf32> to vector<1x128xf32>
    %c0_59 = arith.constant 0 : index
    %c24_60 = arith.constant 24 : index
    %c128_61 = arith.constant 128 : index
    %149 = vector.load %arg3[%c0_59, %c24_60, %c128_61] : memref<1x64x256xf32, #tpu.memory_space<vmem>>, vector<1x8x128xf32>
    %150 = vector.shape_cast %149 : vector<1x8x128xf32> to vector<8x128xf32>
    %151 = vector.broadcast %148 : vector<1x128xf32> to vector<8x128xf32>
    %152 = arith.mulf %151, %150 : vector<8x128xf32>
    %153 = arith.addf %147, %152 : vector<8x128xf32>
    %154 = vector.extract_strided_slice %130 {offsets = [4, 0], sizes = [1, 128], strides = [1, 1]} : vector<8x128xf32> to vector<1x128xf32>
    %c0_62 = arith.constant 0 : index
    %c32_63 = arith.constant 32 : index
    %c128_64 = arith.constant 128 : index
    %155 = vector.load %arg3[%c0_62, %c32_63, %c128_64] : memref<1x64x256xf32, #tpu.memory_space<vmem>>, vector<1x8x128xf32>
    %156 = vector.shape_cast %155 : vector<1x8x128xf32> to vector<8x128xf32>
    %157 = vector.broadcast %154 : vector<1x128xf32> to vector<8x128xf32>
    %158 = arith.mulf %157, %156 : vector<8x128xf32>
    %159 = arith.addf %153, %158 : vector<8x128xf32>
    %160 = vector.extract_strided_slice %130 {offsets = [5, 0], sizes = [1, 128], strides = [1, 1]} : vector<8x128xf32> to vector<1x128xf32>
    %c0_65 = arith.constant 0 : index
    %c40_66 = arith.constant 40 : index
    %c128_67 = arith.constant 128 : index
    %161 = vector.load %arg3[%c0_65, %c40_66, %c128_67] : memref<1x64x256xf32, #tpu.memory_space<vmem>>, vector<1x8x128xf32>
    %162 = vector.shape_cast %161 : vector<1x8x128xf32> to vector<8x128xf32>
    %163 = vector.broadcast %160 : vector<1x128xf32> to vector<8x128xf32>
    %164 = arith.mulf %163, %162 : vector<8x128xf32>
    %165 = arith.addf %159, %164 : vector<8x128xf32>
    %166 = vector.extract_strided_slice %130 {offsets = [6, 0], sizes = [1, 128], strides = [1, 1]} : vector<8x128xf32> to vector<1x128xf32>
    %c0_68 = arith.constant 0 : index
    %c48_69 = arith.constant 48 : index
    %c128_70 = arith.constant 128 : index
    %167 = vector.load %arg3[%c0_68, %c48_69, %c128_70] : memref<1x64x256xf32, #tpu.memory_space<vmem>>, vector<1x8x128xf32>
    %168 = vector.shape_cast %167 : vector<1x8x128xf32> to vector<8x128xf32>
    %169 = vector.broadcast %166 : vector<1x128xf32> to vector<8x128xf32>
    %170 = arith.mulf %169, %168 : vector<8x128xf32>
    %171 = arith.addf %165, %170 : vector<8x128xf32>
    %172 = vector.extract_strided_slice %130 {offsets = [7, 0], sizes = [1, 128], strides = [1, 1]} : vector<8x128xf32> to vector<1x128xf32>
    %c0_71 = arith.constant 0 : index
    %c56_72 = arith.constant 56 : index
    %c128_73 = arith.constant 128 : index
    %173 = vector.load %arg3[%c0_71, %c56_72, %c128_73] : memref<1x64x256xf32, #tpu.memory_space<vmem>>, vector<1x8x128xf32>
    %174 = vector.shape_cast %173 : vector<1x8x128xf32> to vector<8x128xf32>
    %175 = vector.broadcast %172 : vector<1x128xf32> to vector<8x128xf32>
    %176 = arith.mulf %175, %174 : vector<8x128xf32>
    %177 = arith.addf %171, %176 : vector<8x128xf32>
    %c0_74 = arith.constant 0 : index
    %c0_75 = arith.constant 0 : index
    %c128_76 = arith.constant 128 : index
    %178 = vector.load %arg6[%c0_74, %c0_75, %c128_76] : memref<1x8x256xf32, #tpu.memory_space<vmem>>, vector<1x8x128xf32>
    %179 = vector.shape_cast %178 : vector<1x8x128xf32> to vector<8x128xf32>
    %180 = vector.shape_cast %177 : vector<8x128xf32> to vector<1x8x128xf32>
    tpu.vector_store %arg6[%c0_74, %c0_75, %c128_76], %180 {strides = array<i32>} : memref<1x8x256xf32, #tpu.memory_space<vmem>>, vector<1x8x128xf32>,
    return
  }
  func.func @transform_0(%arg0: i32, %arg1: i32) -> (i32, i32, i32) {
    %c0_i32 = arith.constant 0 : i32
    %c0_i32_0 = arith.constant 0 : i32
    return %arg0, %c0_i32, %arg1 : i32, i32, i32
  }
  func.func @transform_1(%arg0: i32, %arg1: i32) -> (i32, i32, i32) {
    %c0_i32 = arith.constant 0 : i32
    %c0_i32_0 = arith.constant 0 : i32
    return %arg0, %c0_i32, %arg1 : i32, i32, i32
  }
  func.func @transform_2(%arg0: i32, %arg1: i32) -> (i32, i32) {
    %c0_i32 = arith.constant 0 : i32
    %c0_i32_0 = arith.constant 0 : i32
    %c0_i32_1 = arith.constant 0 : i32
    return %c0_i32, %c0_i32_0 : i32, i32
  }
  func.func @transform_3(%arg0: i32, %arg1: i32) -> (i32, i32) {
    %c0_i32 = arith.constant 0 : i32
    %c0_i32_0 = arith.constant 0 : i32
    %c0_i32_1 = arith.constant 0 : i32
    return %c0_i32, %c0_i32_0 : i32, i32
  }
  func.func @transform_4(%arg0: i32, %arg1: i32) -> (i32, i32, i32) {
    %c0_i32 = arith.constant 0 : i32
    %c0_i32_0 = arith.constant 0 : i32
    return %arg0, %c0_i32, %arg1 : i32, i32, i32
  }
}

</mosaic_0001>

<llo_original>
// kernel: tpu_custom_call.1
$region0: #{tpu_custom_call.1}
  #allocation0 [shape = 'u32[]', space=smem, size = 0x4, offset = 0x4, fixed_abs, tag = 'smem constant byte address 0x4 - core index']
  #allocation1 [shape = 'u32[144,128]{1,0:T(1,128)}', space=vmem, size = 0x12000, scoped, tag = 'internal scratch']
  %s0 = inlined_call_operand.hbm [shape: f32[2,8,384], index: 0, kind: input, shape index: {}]
  %s1 = inlined_call_operand.hbm [shape: f32[2,64,384], index: 1, kind: input, shape index: {}]
  %s2 = inlined_call_operand.vmem [shape: f32[8,64], index: 2, kind: input, shape index: {}]
  %s3 = inlined_call_operand.vmem [shape: f32[8,2], index: 3, kind: input, shape index: {}]
  %s4 = inlined_call_operand.hbm [shape: f32[2,8,384], index: 4, kind: output, shape index: {}]
  %s5 = sld [smem:[#allocation0]]
  $region57: #{tpu_custom_call.1} parent=0
    _
  %s7 = ssub.s32 1, %s5
  %s8 = scalar_select 0, %s7, %s5
  $region1: #{tpu_custom_call.1} parent=0
    #allocation2 [shape = 'u8[16384]{0}', space=vmem, size = 0x4000, scoped, tag = 'input window, operand 0']
    #allocation3 [shape = 's32[2]{0}', space=sflag, size = 0x8, scoped, tag = 'scoped memory for tpu_custom_call.1']
    #allocation4 [shape = 's32[2]{0}', space=sflag, size = 0x8, scoped, tag = 'scoped memory for tpu_custom_call.1']
    #allocation5 [shape = 'u8[131072]{0}', space=vmem, size = 0x20000, scoped, tag = 'input window, operand 1']
    #allocation6 [shape = 's32[2]{0}', space=sflag, size = 0x8, scoped, tag = 'scoped memory for tpu_custom_call.1']
    #allocation7 [shape = 'u8[16384]{0}', space=vmem, size = 0x4000, scoped, tag = 'output window, operand 0']
    %9 = vsyncpa [#allocation3], 0
    %s10 = scalar_lea.sflag [#allocation3], 1
    %11 = vsyncpa %s10, 0
    %12 = vsyncpa [#allocation6], 0
    %s13 = scalar_lea.sflag [#allocation6], 1
    %14 = vsyncpa %s13, 0
    %15 = vsyncpa [#allocation4], 0
    %s16 = scalar_lea.sflag [#allocation4], 1
    %17 = vsyncpa %s16, 0
    loop: start=0, step=1, limit=6
    $region2: #{tpu_custom_call.1} parent=1 // loop_pre_header
      _
    $region3: #{tpu_custom_call.1} parent=1 // loop_header
      %s19 = sphi 0, %s23
      %p20 = scmp.ge.s32.totalorder %s19, 6
      %s26 = sphi 0, %s38
      %s27 = sphi 0, %s34
      %s28 = sphi 0, %s26
      %s29 = sphi 0, %s27
      %s30 = sphi 0, %s28
      %s31 = sphi 0, %s29
      %s43 = sphi 0, %s45
      %s46 = sphi 0, %s43
      %s47 = sphi 0, %s46
      %s63 = sphi 0, %s47
      %s71 = sphi 0, %s73
      %s74 = sphi 0, %s71
      %s75 = sphi 0, %s74
      %s91 = sphi 0, %s75
      %s95 = sphi 0, %s95
      %s97 = sphi 0, %s95
      %s98 = sphi 0, %s97
      %s112 = sphi 0, %s98
      %s116 = sphi 0, %s116
      %s118 = sphi 0, %s116
      %s119 = sphi 0, %s118
      %s133 = sphi 0, %s119
      %s141 = sphi 0, %s143
      %s144 = sphi 0, %s141
      %s145 = sphi 0, %s144
      %s161 = sphi 0, %s145
    $region4: #{tpu_custom_call.1} parent=1 // loop_header_branch
      %22 = sbr.rel (%p20) target = $region8
    $region5: #{tpu_custom_call.1} parent=1 // loop_body
      %s24 = ssub.s32 %s19, 1
      %s25 = ssub.s32 %s19, 2
      %s32 = sadd.s32 1, %s27
      %p33 = scmp.ge.s32.totalorder %s32, 2
      %s34 = scalar_select %p33, 0, %s32
      %s35 = sadd.s32 1, %s26
      %s36 = scalar_select %p33, %s35, %s26
      %p37 = scmp.ge.s32.totalorder %s36, 2
      %s38 = scalar_select %p37, 0, %s36
      %s39 = ssub.s32 %s26, %s38
      %s40 = ssub.s32 %s27, %s34
      %s41 = sor.u32 %s39, %s40
      %p42 = scmp.eq.s32.totalorder %s41, 0
      %s44 = sadd.s32 %s43, 1
      %s45 = scalar_select %p42, %s43, %s44
      %p48 = pneg %p42
      %p49 = scmp.eq.s32.totalorder %s19, 3
      %p50 = por %p48, %p49
      %p51 = scmp.ne.s32.totalorder %s43, %s46
      %p52 = scmp.eq.s32.totalorder %s19, 0
      %p53 = por %p51, %p52
      %p54 = scmp.ne.s32.totalorder %s43, %s46
      %p55 = scmp.eq.s32.totalorder %s24, 3
      %p56 = por %p54, %p55
      %p57 = scmp.ne.s32.totalorder %s46, %s47
      %p58 = scmp.eq.s32.totalorder %s24, 0
      %p59 = por %p57, %p58
      %p60 = scmp.ne.s32.totalorder %s46, %s47
      %p61 = scmp.eq.s32.totalorder %s25, 3
      %p62 = por %p60, %p61
      %p64 = scmp.ne.s32.totalorder %s47, %s63
      %p65 = scmp.eq.s32.totalorder %s25, 0
      %p66 = por %p64, %p65
      %s67 = ssub.s32 %s26, %s38
      %s68 = ssub.s32 %s27, %s34
      %s69 = sor.u32 %s67, %s68
      %p70 = scmp.eq.s32.totalorder %s69, 0
      %s72 = sadd.s32 %s71, 1
      %s73 = scalar_select %p70, %s71, %s72
      %p76 = pneg %p70
      %p77 = scmp.eq.s32.totalorder %s19, 3
      %p78 = por %p76, %p77
      %p79 = scmp.ne.s32.totalorder %s71, %s74
      %p80 = scmp.eq.s32.totalorder %s19, 0
      %p81 = por %p79, %p80
      %p82 = scmp.ne.s32.totalorder %s71, %s74
      %p83 = scmp.eq.s32.totalorder %s24, 3
      %p84 = por %p82, %p83
      %p85 = scmp.ne.s32.totalorder %s74, %s75
      %p86 = scmp.eq.s32.totalorder %s24, 0
      %p87 = por %p85, %p86
      %p88 = scmp.ne.s32.totalorder %s74, %s75
      %p89 = scmp.eq.s32.totalorder %s25, 3
      %p90 = por %p88, %p89
      %p92 = scmp.ne.s32.totalorder %s75, %s91
      %p93 = scmp.eq.s32.totalorder %s25, 0
      %p94 = por %p92, %p93
      %s96 = sadd.s32 %s95, 1
      %p99 = scmp.eq.s32.totalorder %s19, 3
      %p100 = scmp.ne.s32.totalorder %s95, %s97
      %p101 = scmp.eq.s32.totalorder %s19, 0
      %p102 = por %p100, %p101
      %p103 = scmp.ne.s32.totalorder %s95, %s97
      %p104 = scmp.eq.s32.totalorder %s24, 3
      %p105 = por %p103, %p104
      %p106 = scmp.ne.s32.totalorder %s97, %s98
      %p107 = scmp.eq.s32.totalorder %s24, 0
      %p108 = por %p106, %p107
      %p109 = scmp.ne.s32.totalorder %s97, %s98
      %p110 = scmp.eq.s32.totalorder %s25, 3
      %p111 = por %p109, %p110
      %p113 = scmp.ne.s32.totalorder %s98, %s112
      %p114 = scmp.eq.s32.totalorder %s25, 0
      %p115 = por %p113, %p114
      %s117 = sadd.s32 %s116, 1
      %p120 = scmp.eq.s32.totalorder %s19, 3
      %p121 = scmp.ne.s32.totalorder %s116, %s118
      %p122 = scmp.eq.s32.totalorder %s19, 0
      %p123 = por %p121, %p122
      %p124 = scmp.ne.s32.totalorder %s116, %s118
      %p125 = scmp.eq.s32.totalorder %s24, 3
      %p126 = por %p124, %p125
      %p127 = scmp.ne.s32.totalorder %s118, %s119
      %p128 = scmp.eq.s32.totalorder %s24, 0
      %p129 = por %p127, %p128
      %p130 = scmp.ne.s32.totalorder %s118, %s119
      %p131 = scmp.eq.s32.totalorder %s25, 3
      %p132 = por %p130, %p131
      %p134 = scmp.ne.s32.totalorder %s119, %s133
      %p135 = scmp.eq.s32.totalorder %s25, 0
      %p136 = por %p134, %p135
      %s137 = ssub.s32 %s26, %s38
      %s138 = ssub.s32 %s27, %s34
      %s139 = sor.u32 %s137, %s138
      %p140 = scmp.eq.s32.totalorder %s139, 0
      %s142 = sadd.s32 %s141, 1
      %s143 = scalar_select %p140, %s141, %s142
      %p146 = pneg %p140
      %p147 = scmp.eq.s32.totalorder %s19, 3
      %p148 = por %p146, %p147
      %p149 = scmp.ne.s32.totalorder %s141, %s144
      %p150 = scmp.eq.s32.totalorder %s19, 0
      %p151 = por %p149, %p150
      %p152 = scmp.ne.s32.totalorder %s141, %s144
      %p153 = scmp.eq.s32.totalorder %s24, 3
      %p154 = por %p152, %p153
      %p155 = scmp.ne.s32.totalorder %s144, %s145
      %p156 = scmp.eq.s32.totalorder %s24, 0
      %p157 = por %p155, %p156
      %p158 = scmp.ne.s32.totalorder %s144, %s145
      %p159 = scmp.eq.s32.totalorder %s25, 3
      %p160 = por %p158, %p159
      %p162 = scmp.ne.s32.totalorder %s145, %s161
      %p163 = scmp.eq.s32.totalorder %s25, 0
      %p164 = por %p162, %p163
      %p165 = scmp.le.s32.totalorder 1, %s19
      %p166 = scmp.lt.s32.totalorder %s19, 5
      %p167 = pnand %p165, %p166
      %p168 = pneg %p167
      // Predicated region
      $region9: #{tpu_custom_call.1} parent=5 // pred_check
        _
      $region10: #{tpu_custom_call.1} parent=5 // pred_check_branch
        %170 = sbr.rel (%p167) target = $region12
      $region11: #{tpu_custom_call.1} parent=5 // pred_region
        %s171 = ssub.s32 %s19, 1
        // Predicated region
        $region13: #{tpu_custom_call.1} parent=11 // pred_check
          %p172 = pneg %p108
        $region14: #{tpu_custom_call.1} parent=11 // pred_check_branch
          %174 = sbr.rel (%p172) target = $region16
        $region15: #{tpu_custom_call.1} parent=11 // pred_region
          _
        $region16: #{tpu_custom_call.1} parent=11 // pred_fallthru
          _
        // Predicated region
        $region17: #{tpu_custom_call.1} parent=11 // pred_check
          %p175 = pneg %p129
        $region18: #{tpu_custom_call.1} parent=11 // pred_check_branch
          %177 = sbr.rel (%p175) target = $region20
        $region19: #{tpu_custom_call.1} parent=11 // pred_region
          _
        $region20: #{tpu_custom_call.1} parent=11 // pred_fallthru
          _
      $region12: #{tpu_custom_call.1} parent=5 // pred_fallthru
        _
      %p178 = scmp.lt.s32.totalorder %s19, 4
      // Predicated region
      $region21: #{tpu_custom_call.1} parent=5 // pred_check
        %p179 = pneg %p178
      $region22: #{tpu_custom_call.1} parent=5 // pred_check_branch
        %181 = sbr.rel (%p179) target = $region24
      $region23: #{tpu_custom_call.1} parent=5 // pred_region
        // Predicated region
        $region25: #{tpu_custom_call.1} parent=23 // pred_check
          %p182 = pneg %p53
        $region26: #{tpu_custom_call.1} parent=23 // pred_check_branch
          %184 = sbr.rel (%p182) target = $region28
        $region27: #{tpu_custom_call.1} parent=23 // pred_region
          %s185 = sand.u32 %s43, 1
          %s186 = scalar_lea.sflag [#allocation3], %s185
          %s187 = sand.u32 %s43, 1
          %s188 = smul.addr %s187, 16
          %s189 = scalar_lea.vmem [#allocation2], %s188
          %s190 = smul.u32 2, %s27
          %s191 = ssub.s32 3, %s190
          %p192 = scmp.lt.s32.totalorder %s191, 2
          %s193 = scalar_select %p192, %s191, 2
          %s194 = smul.u32 128, %s193
          %s196 = ssub.s32 256, %s194
          %197 = vsyncadd %s186, %s196
          %p198 = scmp.ne.s32.totalorder 0, %s194
          %s199 = smul.addr %s26, 3
          %s200 = sadd.s32 %s190, %s199
          %s201 = smul.addr %s200, 128
          %s202 = scalar_lea.hbm %s0, %s201
          %s203 = smul.u32 %s193, 8
          %s204 = sshll.u32 %s203, 4
          %s205 = sshll.u32 %s189, 4
          %s206 = int_to_ptr.vmem [resolvable:$true] %s205
          %208 = dma.hbm_to_vmem [thread:$0]  (%p198), %s202, %s204, %s206, %s186
        $region28: #{tpu_custom_call.1} parent=23 // pred_fallthru
          _
        // Predicated region
        $region29: #{tpu_custom_call.1} parent=23 // pred_check
          %p209 = pneg %p81
        $region30: #{tpu_custom_call.1} parent=23 // pred_check_branch
          %211 = sbr.rel (%p209) target = $region32
        $region31: #{tpu_custom_call.1} parent=23 // pred_region
          %s212 = sand.u32 %s71, 1
          %s213 = scalar_lea.sflag [#allocation6], %s212
          %s214 = sand.u32 %s71, 1
          %s215 = smul.addr %s214, 128
          %s216 = scalar_lea.vmem [#allocation5], %s215
          %s217 = smul.u32 2, %s27
          %s218 = ssub.s32 3, %s217
          %p219 = scmp.lt.s32.totalorder %s218, 2
          %s220 = scalar_select %p219, %s218, 2
          %s221 = smul.u32 1024, %s220
          %s223 = ssub.s32 2048, %s221
          %224 = vsyncadd %s213, %s223
          %p225 = scmp.ne.s32.totalorder 0, %s221
          %s226 = smul.addr %s26, 24
          %s227 = sadd.s32 %s217, %s226
          %s228 = smul.addr %s227, 128
          %s229 = scalar_lea.hbm %s1, %s228
          %s230 = smul.u32 %s220, 8
          %s231 = smul.u32 %s230, 8
          %s232 = sshll.u32 %s216, 4
          %s233 = int_to_ptr.vmem [resolvable:$true] %s232
          %s234 = sshll.u32 %s231, 4
          %238 = dma.hbm_to_vmem [thread:$0]  (%p225), %s229, %s234, %s233, %s213, 384, 256, %s230
        $region32: #{tpu_custom_call.1} parent=23 // pred_fallthru
          _
      $region24: #{tpu_custom_call.1} parent=5 // pred_fallthru
        _
      %p239 = scmp.le.s32.totalorder 1, %s19
      %p240 = scmp.lt.s32.totalorder %s19, 5
      %p241 = pnand %p239, %p240
      %p242 = pneg %p241
      // Predicated region
      $region33: #{tpu_custom_call.1} parent=5 // pred_check
        _
      $region34: #{tpu_custom_call.1} parent=5 // pred_check_branch
        %244 = sbr.rel (%p241) target = $region36
      $region35: #{tpu_custom_call.1} parent=5 // pred_region
        %s245 = ssub.s32 %s19, 1
        %s246 = sand.u32 %s46, 1
        %s247 = scalar_lea.sflag [#allocation3], %s246
        %s248 = sand.u32 %s46, 1
        %s249 = smul.addr %s248, 16
        %s250 = scalar_lea.vmem [#allocation2], %s249
        // Predicated region
        $region37: #{tpu_custom_call.1} parent=35 // pred_check
          %p251 = pneg %p59
        $region38: #{tpu_custom_call.1} parent=35 // pred_check_branch
          %253 = sbr.rel (%p251) target = $region40
        $region39: #{tpu_custom_call.1} parent=35 // pred_region
          %254 = dma.done %s247, 256
        $region40: #{tpu_custom_call.1} parent=35 // pred_fallthru
          _
        %s255 = sand.u32 %s74, 1
        %s256 = scalar_lea.sflag [#allocation6], %s255
        %s257 = sand.u32 %s74, 1
        %s258 = smul.addr %s257, 128
        %s259 = scalar_lea.vmem [#allocation5], %s258
        // Predicated region
        $region41: #{tpu_custom_call.1} parent=35 // pred_check
          %p260 = pneg %p87
        $region42: #{tpu_custom_call.1} parent=35 // pred_check_branch
          %262 = sbr.rel (%p260) target = $region44
        $region43: #{tpu_custom_call.1} parent=35 // pred_region
          %263 = dma.done %s256, 2048
        $region44: #{tpu_custom_call.1} parent=35 // pred_fallthru
          _
        %s264 = sand.u32 %s46, 1
        %s265 = scalar_lea.sflag [#allocation3], %s264
        %s266 = sand.u32 %s46, 1
        %s267 = smul.addr %s266, 16
        %s268 = scalar_lea.vmem [#allocation2], %s267
        %p269 = pneg %p59
        %p270 = pneg %p56
        %s271 = sand.u32 %s74, 1
        %s272 = scalar_lea.sflag [#allocation6], %s271
        %s273 = sand.u32 %s74, 1
        %s274 = smul.addr %s273, 128
        %s275 = scalar_lea.vmem [#allocation5], %s274
        %p276 = pneg %p87
        %p277 = pneg %p84
        %p278 = pneg %p108
        %p279 = pneg %p105
        %p280 = pneg %p129
        %p281 = pneg %p126
        %p282 = pneg %p157
        %p283 = pneg %p154
        %s284 = sand.u32 %s144, 1
        %s285 = scalar_lea.sflag [#allocation4], %s284
        %s286 = sand.u32 %s144, 1
        %s287 = smul.addr %s286, 16
        %s288 = scalar_lea.vmem [#allocation7], %s287
        %s289 = smul.u32 2, %s29
        %s290 = ssub.s32 3, %s289
        %p291 = scmp.lt.s32.totalorder %s290, 2
        %s292 = scalar_select %p291, %s290, 2
        %s293 = smul.u32 128, %s292
        %s294 = smul.u32 2, %s29
        %s295 = ssub.s32 3, %s294
        %p296 = scmp.lt.s32.totalorder %s295, 2
        %s297 = scalar_select %p296, %s295, 2
        %s298 = smul.u32 1024, %s297
        %s299 = smul.u32 2, %s29
        %s300 = ssub.s32 3, %s299
        %p301 = scmp.lt.s32.totalorder %s300, 2
        %s302 = scalar_select %p301, %s300, 2
        %s303 = smul.u32 128, %s302
        %v304 = vld [vmem:[%s2] sm:$0xff]
        %v305 = vld [vmem:[%s3] sm:$0xff]
        %v306 = vld [vmem:[%s3] sm:$0x1]
        %v307 = vld [vmem:[%s259] sm:$0xff]
        %v308 = vld [vmem:[%s259 + $0x10] sm:$0xff]
        %v309 = vld [vmem:[%s259 + $0x20] sm:$0xff]
        %v310 = vld [vmem:[%s259 + $0x30] sm:$0xff]
        %v311 = vld [vmem:[%s259 + $0x40] sm:$0xff]
        %v312 = vld [vmem:[%s259 + $0x50] sm:$0xff]
        %v313 = vld [vmem:[%s259 + $0x60] sm:$0xff]
        %v314 = vld [vmem:[%s259 + $0x70] sm:$0xff]
        %v315 = vld [vmem:[%s250] sm:$0xff]
        %317 = vset.pattern.permute.xlu0 0
        %318 = vperm.xlu0 %317, %v305
        %v319 = vpop.permute.xlu0 %318
        %v321 = vmul.f32 %v315, %v319
        %v322 = vrot.slane %v321, 4
        %v323 = vadd.f32 %v321, %v322
        %v324 = vrot.slane %v323, 2
        %v325 = vadd.f32 %v323, %v324
        %v326 = vrot.slane %v325, 1
        %v327 = vadd.f32 %v325, %v326
        %329 = vset.pattern.permute.xlu0 1
        %330 = vperm.xlu0 %329, %v306
        %v331 = vpop.permute.xlu0 %330
        %v333 = vadd.f32 %v327, %v331
        %v334 = vlaneseq
        %v335 = vshrl.u32 %v334, 7
        %v336 = vsub.s32 0, %v335
        %v337 = vrot.slane %v333, %v336
        %vm338 = vcmask 523264
        %v340 = vsel %vm338, %v304, 0
        %342 = vmatprep.subr.mxu0 0.0
        %v343 = vand.u32 %v307, 4294901760
        %344 = vmatpush1.msra.mxu0 %v343
        %345 = vmatprep.subr.mxu0 0.0
        %v346 = vand.u32 %v308, 4294901760
        %347 = vmatpush1.msra.mxu0 %v346
        %348 = vmatprep.subr.mxu0 0.0
        %v349 = vand.u32 %v309, 4294901760
        %350 = vmatpush1.msra.mxu0 %v349
        %351 = vmatprep.subr.mxu0 0.0
        %v352 = vand.u32 %v310, 4294901760
        %353 = vmatpush1.msra.mxu0 %v352
        %354 = vmatprep.subr.mxu0 0.0
        %v355 = vand.u32 %v311, 4294901760
        %356 = vmatpush1.msra.mxu0 %v355
        %357 = vmatprep.subr.mxu0 0.0
        %v358 = vand.u32 %v312, 4294901760
        %359 = vmatpush1.msra.mxu0 %v358
        %360 = vmatprep.subr.mxu0 0.0
        %v361 = vand.u32 %v313, 4294901760
        %362 = vmatpush1.msra.mxu0 %v361
        %363 = vmatprep.subr.mxu0 0.0
        %v364 = vand.u32 %v314, 4294901760
        %365 = vmatpush1.msra.mxu0 %v364
        %366 = vmatprep.subr.mxu0 0.0
        %367 = vmatpush1.msra.mxu0 0.0
        %368 = vmatprep.subr.mxu0 0.0
        %369 = vmatpush1.msra.mxu0 0.0
        %370 = vmatprep.subr.mxu0 0.0
        %371 = vmatpush1.msra.mxu0 0.0
        %372 = vmatprep.subr.mxu0 0.0
        %373 = vmatpush1.msra.mxu0 0.0
        %374 = vmatprep.subr.mxu0 0.0
        %375 = vmatpush1.msra.mxu0 0.0
        %376 = vmatprep.subr.mxu0 0.0
        %377 = vmatpush1.msra.mxu0 0.0
        %378 = vmatprep.subr.mxu0 0.0
        %379 = vmatpush1.msra.mxu0 0.0
        %380 = vmatprep.subr.mxu0 0.0
        %381 = vmatpush1.msra.mxu0 0.0
        %382 = vmatprep.subr.mxu0 0.0
        %383 = vmatpush1.msra.mxu0 0.0
        %384 = vmatprep.subr.mxu0 0.0
        %385 = vmatpush1.msra.mxu0 0.0
        %386 = vmatprep.subr.mxu0 0.0
        %387 = vmatpush1.msra.mxu0 0.0
        %388 = vmatprep.subr.mxu0 0.0
        %389 = vmatpush1.msra.mxu0 0.0
        %390 = vmatprep.subr.mxu0 0.0
        %391 = vmatpush1.msra.mxu0 0.0
        %392 = vmatprep.subr.mxu0 0.0
        %393 = vmatpush1.msra.mxu0 0.0
        %394 = vmatprep.subr.mxu0 0.0
        %395 = vmatpush1.msra.mxu0 0.0
        %396 = vmatprep.subr.mxu0 0.0
        %397 = vmatpush1.msra.mxu0 0.0
        %398 = vmatprep.subr.mxu0 0.0
        %399 = vmatpush1.msra.mxu0 0.0
        %400 = vmatprep.subr.mxu0 0.0
        %401 = vmatpush1.msra.mxu0 0.0
        %402 = vmatprep.subr.mxu0 0.0
        %403 = vmatpush1.msra.mxu0 0.0
        %404 = vmatprep.subr.mxu0 0.0
        %405 = vmatpush1.msra.mxu0 0.0
        %406 = vmatprep.subr.mxu0 0.0
        %407 = vmatpush1.msra.mxu0 0.0
        %408 = vmatprep.subr.mxu0 0.0
        %409 = vmatpush1.msra.mxu0 0.0
        %410 = vmatprep.subr.mxu0 0.0
        %411 = vmatpush1.msra.mxu0 0.0
        %412 = vmatprep.subr.mxu0 0.0
        %413 = vmatpush1.msra.mxu0 0.0
        %414 = vmatprep.mubr.f32.mxu0 0.0
        %v415 = vand.u32 %v340, 4294901760
        %v416 = vsub.f32 %v340, %v415
        %v417 = vand.u32 %v416, 4294901760
        %v418 = vsub.f32 %v416, %v417
        %v419 = vand.u32 %v418, 4294901760
        %420 = vmatmul.mubr.f32.gmra.mrb[0].mxu0 %v419
        %v421 = vpop.f32.mrb[0].mxu0
        %v422 = vadd.f32 %v337, %v421
        %v423 = vpop.f32.mrb[0].mxu0
        %424 = vdwg.mxu0
        %425 = vmatprep.subr.mxu0 0.0
        %v426 = vand.u32 %v307, 4294901760
        %v427 = vsub.f32 %v307, %v426
        %v428 = vand.u32 %v427, 4294901760
        %v429 = vsub.f32 %v427, %v428
        %v430 = vand.u32 %v429, 4294901760
        %431 = vmatpush1.msra.mxu0 %v430
        %432 = vmatprep.subr.mxu0 0.0
        %v433 = vand.u32 %v308, 4294901760
        %v434 = vsub.f32 %v308, %v433
        %v435 = vand.u32 %v434, 4294901760
        %v436 = vsub.f32 %v434, %v435
        %v437 = vand.u32 %v436, 4294901760
        %438 = vmatpush1.msra.mxu0 %v437
        %439 = vmatprep.subr.mxu0 0.0
        %v440 = vand.u32 %v309, 4294901760
        %v441 = vsub.f32 %v309, %v440
        %v442 = vand.u32 %v441, 4294901760
        %v443 = vsub.f32 %v441, %v442
        %v444 = vand.u32 %v443, 4294901760
        %445 = vmatpush1.msra.mxu0 %v444
        %446 = vmatprep.subr.mxu0 0.0
        %v447 = vand.u32 %v310, 4294901760
        %v448 = vsub.f32 %v310, %v447
        %v449 = vand.u32 %v448, 4294901760
        %v450 = vsub.f32 %v448, %v449
        %v451 = vand.u32 %v450, 4294901760
        %452 = vmatpush1.msra.mxu0 %v451
        %453 = vmatprep.subr.mxu0 0.0
        %v454 = vand.u32 %v311, 4294901760
        %v455 = vsub.f32 %v311, %v454
        %v456 = vand.u32 %v455, 4294901760
        %v457 = vsub.f32 %v455, %v456
        %v458 = vand.u32 %v457, 4294901760
        %459 = vmatpush1.msra.mxu0 %v458
        %460 = vmatprep.subr.mxu0 0.0
        %v461 = vand.u32 %v312, 4294901760
        %v462 = vsub.f32 %v312, %v461
        %v463 = vand.u32 %v462, 4294901760
        %v464 = vsub.f32 %v462, %v463
        %v465 = vand.u32 %v464, 4294901760
        %466 = vmatpush1.msra.mxu0 %v465
        %467 = vmatprep.subr.mxu0 0.0
        %v468 = vand.u32 %v313, 4294901760
        %v469 = vsub.f32 %v313, %v468
        %v470 = vand.u32 %v469, 4294901760
        %v471 = vsub.f32 %v469, %v470
        %v472 = vand.u32 %v471, 4294901760
        %473 = vmatpush1.msra.mxu0 %v472
        %474 = vmatprep.subr.mxu0 0.0
        %v475 = vand.u32 %v314, 4294901760
        %v476 = vsub.f32 %v314, %v475
        %v477 = vand.u32 %v476, 4294901760
        %v478 = vsub.f32 %v476, %v477
        %v479 = vand.u32 %v478, 4294901760
        %480 = vmatpush1.msra.mxu0 %v479
        %481 = vmatprep.subr.mxu0 0.0
        %482 = vmatpush1.msra.mxu0 0.0
        %483 = vmatprep.subr.mxu0 0.0
        %484 = vmatpush1.msra.mxu0 0.0
        %485 = vmatprep.subr.mxu0 0.0
        %486 = vmatpush1.msra.mxu0 0.0
        %487 = vmatprep.subr.mxu0 0.0
        %488 = vmatpush1.msra.mxu0 0.0
        %489 = vmatprep.subr.mxu0 0.0
        %490 = vmatpush1.msra.mxu0 0.0
        %491 = vmatprep.subr.mxu0 0.0
        %492 = vmatpush1.msra.mxu0 0.0
        %493 = vmatprep.subr.mxu0 0.0
        %494 = vmatpush1.msra.mxu0 0.0
        %495 = vmatprep.subr.mxu0 0.0
        %496 = vmatpush1.msra.mxu0 0.0
        %497 = vmatprep.subr.mxu0 0.0
        %498 = vmatpush1.msra.mxu0 0.0
        %499 = vmatprep.subr.mxu0 0.0
        %500 = vmatpush1.msra.mxu0 0.0
        %501 = vmatprep.subr.mxu0 0.0
        %502 = vmatpush1.msra.mxu0 0.0
        %503 = vmatprep.subr.mxu0 0.0
        %504 = vmatpush1.msra.mxu0 0.0
        %505 = vmatprep.subr.mxu0 0.0
        %506 = vmatpush1.msra.mxu0 0.0
        %507 = vmatprep.subr.mxu0 0.0
        %508 = vmatpush1.msra.mxu0 0.0
        %509 = vmatprep.subr.mxu0 0.0
        %510 = vmatpush1.msra.mxu0 0.0
        %511 = vmatprep.subr.mxu0 0.0
        %512 = vmatpush1.msra.mxu0 0.0
        %513 = vmatprep.subr.mxu0 0.0
        %514 = vmatpush1.msra.mxu0 0.0
        %515 = vmatprep.subr.mxu0 0.0
        %516 = vmatpush1.msra.mxu0 0.0
        %517 = vmatprep.subr.mxu0 0.0
        %518 = vmatpush1.msra.mxu0 0.0
        %519 = vmatprep.subr.mxu0 0.0
        %520 = vmatpush1.msra.mxu0 0.0
        %521 = vmatprep.subr.mxu0 0.0
        %522 = vmatpush1.msra.mxu0 0.0
        %523 = vmatprep.subr.mxu0 0.0
        %524 = vmatpush1.msra.mxu0 0.0
        %525 = vmatprep.subr.mxu0 0.0
        %526 = vmatpush1.msra.mxu0 0.0
        %527 = vmatprep.subr.mxu0 0.0
        %528 = vmatpush1.msra.mxu0 0.0
        %529 = vmatprep.mubr.f32.mxu0 0.0
        %v530 = vand.u32 %v340, 4294901760
        %531 = vmatmul.mubr.f32.gmra.mrb[0].mxu0 %v530
        %v532 = vpop.f32.mrb[0].mxu0
        %v533 = vadd.f32 %v422, %v532
        %v534 = vpop.f32.mrb[0].mxu0
        %535 = vdwg.mxu0
        %536 = vmatprep.subr.mxu0 0.0
        %v537 = vand.u32 %v307, 4294901760
        %v538 = vsub.f32 %v307, %v537
        %539 = vmatpush1.msra.mxu0 %v538
        %540 = vmatprep.subr.mxu0 0.0
        %v541 = vand.u32 %v308, 4294901760
        %v542 = vsub.f32 %v308, %v541
        %543 = vmatpush1.msra.mxu0 %v542
        %544 = vmatprep.subr.mxu0 0.0
        %v545 = vand.u32 %v309, 4294901760
        %v546 = vsub.f32 %v309, %v545
        %547 = vmatpush1.msra.mxu0 %v546
        %548 = vmatprep.subr.mxu0 0.0
        %v549 = vand.u32 %v310, 4294901760
        %v550 = vsub.f32 %v310, %v549
        %551 = vmatpush1.msra.mxu0 %v550
        %552 = vmatprep.subr.mxu0 0.0
        %v553 = vand.u32 %v311, 4294901760
        %v554 = vsub.f32 %v311, %v553
        %555 = vmatpush1.msra.mxu0 %v554
        %556 = vmatprep.subr.mxu0 0.0
        %v557 = vand.u32 %v312, 4294901760
        %v558 = vsub.f32 %v312, %v557
        %559 = vmatpush1.msra.mxu0 %v558
        %560 = vmatprep.subr.mxu0 0.0
        %v561 = vand.u32 %v313, 4294901760
        %v562 = vsub.f32 %v313, %v561
        %563 = vmatpush1.msra.mxu0 %v562
        %564 = vmatprep.subr.mxu0 0.0
        %v565 = vand.u32 %v314, 4294901760
        %v566 = vsub.f32 %v314, %v565
        %567 = vmatpush1.msra.mxu0 %v566
        %568 = vmatprep.subr.mxu0 0.0
        %569 = vmatpush1.msra.mxu0 0.0
        %570 = vmatprep.subr.mxu0 0.0
        %571 = vmatpush1.msra.mxu0 0.0
        %572 = vmatprep.subr.mxu0 0.0
        %573 = vmatpush1.msra.mxu0 0.0
        %574 = vmatprep.subr.mxu0 0.0
        %575 = vmatpush1.msra.mxu0 0.0
        %576 = vmatprep.subr.mxu0 0.0
        %577 = vmatpush1.msra.mxu0 0.0
        %578 = vmatprep.subr.mxu0 0.0
        %579 = vmatpush1.msra.mxu0 0.0
        %580 = vmatprep.subr.mxu0 0.0
        %581 = vmatpush1.msra.mxu0 0.0
        %582 = vmatprep.subr.mxu0 0.0
        %583 = vmatpush1.msra.mxu0 0.0
        %584 = vmatprep.subr.mxu0 0.0
        %585 = vmatpush1.msra.mxu0 0.0
        %586 = vmatprep.subr.mxu0 0.0
        %587 = vmatpush1.msra.mxu0 0.0
        %588 = vmatprep.subr.mxu0 0.0
        %589 = vmatpush1.msra.mxu0 0.0
        %590 = vmatprep.subr.mxu0 0.0
        %591 = vmatpush1.msra.mxu0 0.0
        %592 = vmatprep.subr.mxu0 0.0
        %593 = vmatpush1.msra.mxu0 0.0
        %594 = vmatprep.subr.mxu0 0.0
        %595 = vmatpush1.msra.mxu0 0.0
        %596 = vmatprep.subr.mxu0 0.0
        %597 = vmatpush1.msra.mxu0 0.0
        %598 = vmatprep.subr.mxu0 0.0
        %599 = vmatpush1.msra.mxu0 0.0
        %600 = vmatprep.subr.mxu0 0.0
        %601 = vmatpush1.msra.mxu0 0.0
        %602 = vmatprep.subr.mxu0 0.0
        %603 = vmatpush1.msra.mxu0 0.0
        %604 = vmatprep.subr.mxu0 0.0
        %605 = vmatpush1.msra.mxu0 0.0
        %606 = vmatprep.subr.mxu0 0.0
        %607 = vmatpush1.msra.mxu0 0.0
        %608 = vmatprep.subr.mxu0 0.0
        %609 = vmatpush1.msra.mxu0 0.0
        %610 = vmatprep.subr.mxu0 0.0
        %611 = vmatpush1.msra.mxu0 0.0
        %612 = vmatprep.subr.mxu0 0.0
        %613 = vmatpush1.msra.mxu0 0.0
        %614 = vmatprep.subr.mxu0 0.0
        %615 = vmatpush1.msra.mxu0 0.0
        %616 = vmatprep.mubr.f32.mxu0 0.0
        %v617 = vand.u32 %v340, 4294901760
        %v618 = vsub.f32 %v340, %v617
        %619 = vmatmul.mubr.f32.gmra.mrb[0].mxu0 %v618
        %v620 = vpop.f32.mrb[0].mxu0
        %v621 = vadd.f32 %v533, %v620
        %v622 = vpop.f32.mrb[0].mxu0
        %623 = vdwg.mxu0
        %624 = vmatprep.subr.mxu0 0.0
        %v625 = vand.u32 %v307, 4294901760
        %626 = vmatpush1.msra.mxu0 %v625
        %627 = vmatprep.subr.mxu0 0.0
        %v628 = vand.u32 %v308, 4294901760
        %629 = vmatpush1.msra.mxu0 %v628
        %630 = vmatprep.subr.mxu0 0.0
        %v631 = vand.u32 %v309, 4294901760
        %632 = vmatpush1.msra.mxu0 %v631
        %633 = vmatprep.subr.mxu0 0.0
        %v634 = vand.u32 %v310, 4294901760
        %635 = vmatpush1.msra.mxu0 %v634
        %636 = vmatprep.subr.mxu0 0.0
        %v637 = vand.u32 %v311, 4294901760
        %638 = vmatpush1.msra.mxu0 %v637
        %639 = vmatprep.subr.mxu0 0.0
        %v640 = vand.u32 %v312, 4294901760
        %641 = vmatpush1.msra.mxu0 %v640
        %642 = vmatprep.subr.mxu0 0.0
        %v643 = vand.u32 %v313, 4294901760
        %644 = vmatpush1.msra.mxu0 %v643
        %645 = vmatprep.subr.mxu0 0.0
        %v646 = vand.u32 %v314, 4294901760
        %647 = vmatpush1.msra.mxu0 %v646
        %648 = vmatprep.subr.mxu0 0.0
        %649 = vmatpush1.msra.mxu0 0.0
        %650 = vmatprep.subr.mxu0 0.0
        %651 = vmatpush1.msra.mxu0 0.0
        %652 = vmatprep.subr.mxu0 0.0
        %653 = vmatpush1.msra.mxu0 0.0
        %654 = vmatprep.subr.mxu0 0.0
        %655 = vmatpush1.msra.mxu0 0.0
        %656 = vmatprep.subr.mxu0 0.0
        %657 = vmatpush1.msra.mxu0 0.0
        %658 = vmatprep.subr.mxu0 0.0
        %659 = vmatpush1.msra.mxu0 0.0
        %660 = vmatprep.subr.mxu0 0.0
        %661 = vmatpush1.msra.mxu0 0.0
        %662 = vmatprep.subr.mxu0 0.0
        %663 = vmatpush1.msra.mxu0 0.0
        %664 = vmatprep.subr.mxu0 0.0
        %665 = vmatpush1.msra.mxu0 0.0
        %666 = vmatprep.subr.mxu0 0.0
        %667 = vmatpush1.msra.mxu0 0.0
        %668 = vmatprep.subr.mxu0 0.0
        %669 = vmatpush1.msra.mxu0 0.0
        %670 = vmatprep.subr.mxu0 0.0
        %671 = vmatpush1.msra.mxu0 0.0
        %672 = vmatprep.subr.mxu0 0.0
        %673 = vmatpush1.msra.mxu0 0.0
        %674 = vmatprep.subr.mxu0 0.0
        %675 = vmatpush1.msra.mxu0 0.0
        %676 = vmatprep.subr.mxu0 0.0
        %677 = vmatpush1.msra.mxu0 0.0
        %678 = vmatprep.subr.mxu0 0.0
        %679 = vmatpush1.msra.mxu0 0.0
        %680 = vmatprep.subr.mxu0 0.0
        %681 = vmatpush1.msra.mxu0 0.0
        %682 = vmatprep.subr.mxu0 0.0
        %683 = vmatpush1.msra.mxu0 0.0
        %684 = vmatprep.subr.mxu0 0.0
        %685 = vmatpush1.msra.mxu0 0.0
        %686 = vmatprep.subr.mxu0 0.0
        %687 = vmatpush1.msra.mxu0 0.0
        %688 = vmatprep.subr.mxu0 0.0
        %689 = vmatpush1.msra.mxu0 0.0
        %690 = vmatprep.subr.mxu0 0.0
        %691 = vmatpush1.msra.mxu0 0.0
        %692 = vmatprep.subr.mxu0 0.0
        %693 = vmatpush1.msra.mxu0 0.0
        %694 = vmatprep.subr.mxu0 0.0
        %695 = vmatpush1.msra.mxu0 0.0
        %696 = vmatprep.mubr.f32.mxu0 0.0
        %v697 = vand.u32 %v340, 4294901760
        %v698 = vsub.f32 %v340, %v697
        %v699 = vand.u32 %v698, 4294901760
        %700 = vmatmul.mubr.f32.gmra.mrb[0].mxu0 %v699
        %v701 = vpop.f32.mrb[0].mxu0
        %v702 = vadd.f32 %v621, %v701
        %v703 = vpop.f32.mrb[0].mxu0
        %704 = vdwg.mxu0
        %705 = vmatprep.subr.mxu0 0.0
        %v706 = vand.u32 %v307, 4294901760
        %v707 = vsub.f32 %v307, %v706
        %v708 = vand.u32 %v707, 4294901760
        %709 = vmatpush1.msra.mxu0 %v708
        %710 = vmatprep.subr.mxu0 0.0
        %v711 = vand.u32 %v308, 4294901760
        %v712 = vsub.f32 %v308, %v711
        %v713 = vand.u32 %v712, 4294901760
        %714 = vmatpush1.msra.mxu0 %v713
        %715 = vmatprep.subr.mxu0 0.0
        %v716 = vand.u32 %v309, 4294901760
        %v717 = vsub.f32 %v309, %v716
        %v718 = vand.u32 %v717, 4294901760
        %719 = vmatpush1.msra.mxu0 %v718
        %720 = vmatprep.subr.mxu0 0.0
        %v721 = vand.u32 %v310, 4294901760
        %v722 = vsub.f32 %v310, %v721
        %v723 = vand.u32 %v722, 4294901760
        %724 = vmatpush1.msra.mxu0 %v723
        %725 = vmatprep.subr.mxu0 0.0
        %v726 = vand.u32 %v311, 4294901760
        %v727 = vsub.f32 %v311, %v726
        %v728 = vand.u32 %v727, 4294901760
        %729 = vmatpush1.msra.mxu0 %v728
        %730 = vmatprep.subr.mxu0 0.0
        %v731 = vand.u32 %v312, 4294901760
        %v732 = vsub.f32 %v312, %v731
        %v733 = vand.u32 %v732, 4294901760
        %734 = vmatpush1.msra.mxu0 %v733
        %735 = vmatprep.subr.mxu0 0.0
        %v736 = vand.u32 %v313, 4294901760
        %v737 = vsub.f32 %v313, %v736
        %v738 = vand.u32 %v737, 4294901760
        %739 = vmatpush1.msra.mxu0 %v738
        %740 = vmatprep.subr.mxu0 0.0
        %v741 = vand.u32 %v314, 4294901760
        %v742 = vsub.f32 %v314, %v741
        %v743 = vand.u32 %v742, 4294901760
        %744 = vmatpush1.msra.mxu0 %v743
        %745 = vmatprep.subr.mxu0 0.0
        %746 = vmatpush1.msra.mxu0 0.0
        %747 = vmatprep.subr.mxu0 0.0
        %748 = vmatpush1.msra.mxu0 0.0
        %749 = vmatprep.subr.mxu0 0.0
        %750 = vmatpush1.msra.mxu0 0.0
        %751 = vmatprep.subr.mxu0 0.0
        %752 = vmatpush1.msra.mxu0 0.0
        %753 = vmatprep.subr.mxu0 0.0
        %754 = vmatpush1.msra.mxu0 0.0
        %755 = vmatprep.subr.mxu0 0.0
        %756 = vmatpush1.msra.mxu0 0.0
        %757 = vmatprep.subr.mxu0 0.0
        %758 = vmatpush1.msra.mxu0 0.0
        %759 = vmatprep.subr.mxu0 0.0
        %760 = vmatpush1.msra.mxu0 0.0
        %761 = vmatprep.subr.mxu0 0.0
        %762 = vmatpush1.msra.mxu0 0.0
        %763 = vmatprep.subr.mxu0 0.0
        %764 = vmatpush1.msra.mxu0 0.0
        %765 = vmatprep.subr.mxu0 0.0
        %766 = vmatpush1.msra.mxu0 0.0
        %767 = vmatprep.subr.mxu0 0.0
        %768 = vmatpush1.msra.mxu0 0.0
        %769 = vmatprep.subr.mxu0 0.0
        %770 = vmatpush1.msra.mxu0 0.0
        %771 = vmatprep.subr.mxu0 0.0
        %772 = vmatpush1.msra.mxu0 0.0
        %773 = vmatprep.subr.mxu0 0.0
        %774 = vmatpush1.msra.mxu0 0.0
        %775 = vmatprep.subr.mxu0 0.0
        %776 = vmatpush1.msra.mxu0 0.0
        %777 = vmatprep.subr.mxu0 0.0
        %778 = vmatpush1.msra.mxu0 0.0
        %779 = vmatprep.subr.mxu0 0.0
        %780 = vmatpush1.msra.mxu0 0.0
        %781 = vmatprep.subr.mxu0 0.0
        %782 = vmatpush1.msra.mxu0 0.0
        %783 = vmatprep.subr.mxu0 0.0
        %784 = vmatpush1.msra.mxu0 0.0
        %785 = vmatprep.subr.mxu0 0.0
        %786 = vmatpush1.msra.mxu0 0.0
        %787 = vmatprep.subr.mxu0 0.0
        %788 = vmatpush1.msra.mxu0 0.0
        %789 = vmatprep.subr.mxu0 0.0
        %790 = vmatpush1.msra.mxu0 0.0
        %791 = vmatprep.subr.mxu0 0.0
        %792 = vmatpush1.msra.mxu0 0.0
        %793 = vmatprep.mubr.f32.mxu0 0.0
        %v794 = vand.u32 %v340, 4294901760
        %795 = vmatmul.mubr.f32.gmra.mrb[0].mxu0 %v794
        %v796 = vpop.f32.mrb[0].mxu0
        %v797 = vadd.f32 %v702, %v796
        %v798 = vpop.f32.mrb[0].mxu0
        %799 = vdwg.mxu0
        %800 = vmatprep.subr.mxu0 0.0
        %v801 = vand.u32 %v307, 4294901760
        %802 = vmatpush1.msra.mxu0 %v801
        %803 = vmatprep.subr.mxu0 0.0
        %v804 = vand.u32 %v308, 4294901760
        %805 = vmatpush1.msra.mxu0 %v804
        %806 = vmatprep.subr.mxu0 0.0
        %v807 = vand.u32 %v309, 4294901760
        %808 = vmatpush1.msra.mxu0 %v807
        %809 = vmatprep.subr.mxu0 0.0
        %v810 = vand.u32 %v310, 4294901760
        %811 = vmatpush1.msra.mxu0 %v810
        %812 = vmatprep.subr.mxu0 0.0
        %v813 = vand.u32 %v311, 4294901760
        %814 = vmatpush1.msra.mxu0 %v813
        %815 = vmatprep.subr.mxu0 0.0
        %v816 = vand.u32 %v312, 4294901760
        %817 = vmatpush1.msra.mxu0 %v816
        %818 = vmatprep.subr.mxu0 0.0
        %v819 = vand.u32 %v313, 4294901760
        %820 = vmatpush1.msra.mxu0 %v819
        %821 = vmatprep.subr.mxu0 0.0
        %v822 = vand.u32 %v314, 4294901760
        %823 = vmatpush1.msra.mxu0 %v822
        %824 = vmatprep.subr.mxu0 0.0
        %825 = vmatpush1.msra.mxu0 0.0
        %826 = vmatprep.subr.mxu0 0.0
        %827 = vmatpush1.msra.mxu0 0.0
        %828 = vmatprep.subr.mxu0 0.0
        %829 = vmatpush1.msra.mxu0 0.0
        %830 = vmatprep.subr.mxu0 0.0
        %831 = vmatpush1.msra.mxu0 0.0
        %832 = vmatprep.subr.mxu0 0.0
        %833 = vmatpush1.msra.mxu0 0.0
        %834 = vmatprep.subr.mxu0 0.0
        %835 = vmatpush1.msra.mxu0 0.0
        %836 = vmatprep.subr.mxu0 0.0
        %837 = vmatpush1.msra.mxu0 0.0
        %838 = vmatprep.subr.mxu0 0.0
        %839 = vmatpush1.msra.mxu0 0.0
        %840 = vmatprep.subr.mxu0 0.0
        %841 = vmatpush1.msra.mxu0 0.0
        %842 = vmatprep.subr.mxu0 0.0
        %843 = vmatpush1.msra.mxu0 0.0
        %844 = vmatprep.subr.mxu0 0.0
        %845 = vmatpush1.msra.mxu0 0.0
        %846 = vmatprep.subr.mxu0 0.0
        %847 = vmatpush1.msra.mxu0 0.0
        %848 = vmatprep.subr.mxu0 0.0
        %849 = vmatpush1.msra.mxu0 0.0
        %850 = vmatprep.subr.mxu0 0.0
        %851 = vmatpush1.msra.mxu0 0.0
        %852 = vmatprep.subr.mxu0 0.0
        %853 = vmatpush1.msra.mxu0 0.0
        %854 = vmatprep.subr.mxu0 0.0
        %855 = vmatpush1.msra.mxu0 0.0
        %856 = vmatprep.subr.mxu0 0.0
        %857 = vmatpush1.msra.mxu0 0.0
        %858 = vmatprep.subr.mxu0 0.0
        %859 = vmatpush1.msra.mxu0 0.0
        %860 = vmatprep.subr.mxu0 0.0
        %861 = vmatpush1.msra.mxu0 0.0
        %862 = vmatprep.subr.mxu0 0.0
        %863 = vmatpush1.msra.mxu0 0.0
        %864 = vmatprep.subr.mxu0 0.0
        %865 = vmatpush1.msra.mxu0 0.0
        %866 = vmatprep.subr.mxu0 0.0
        %867 = vmatpush1.msra.mxu0 0.0
        %868 = vmatprep.subr.mxu0 0.0
        %869 = vmatpush1.msra.mxu0 0.0
        %870 = vmatprep.subr.mxu0 0.0
        %871 = vmatpush1.msra.mxu0 0.0
        %872 = vmatprep.mubr.f32.mxu0 0.0
        %v873 = vand.u32 %v340, 4294901760
        %874 = vmatmul.mubr.f32.gmra.mrb[0].mxu0 %v873
        %v875 = vpop.f32.mrb[0].mxu0
        %v876 = vadd.f32 %v797, %v875
        %v877 = vpop.f32.mrb[0].mxu0
        %878 = vdwg.mxu0
        %vm879 = vcmp.gt.f32.partialorder %v876, 0.0
        %v880 = vmul.f32 %v876, 0.1
        %v881 = vsel %vm879, %v876, %v880
        %s882 = smul.u32 %s29, 256
        %v883 = vlaneseq
        %v884 = vand.u32 %v883, 127
        %v885 = vstv %s882
        %v886 = vadd.s32 %v885, %v884
        %vm887 = vcmp.lt.s32.totalorder %v886, 384
        %v888 = vsel %vm887, 1, 0
        %vm889 = vcmp.eq.s32.totalorder %v888, 1
        %v890 = vsel %vm889, %v881, 0.0
        %v891 = vrot.slane %v890, 4
        %v892 = vmax.f32 %v890, %v891
        %v893 = vrot.slane %v892, 2
        %v894 = vmax.f32 %v892, %v893
        %v895 = vrot.slane %v894, 1
        %v896 = vmax.f32 %v894, %v895
        %v897 = vsub.f32 %v890, %v896
        %v898 = vmul.f32 %v897, 1.442695
        %v899 = vpow.pop %v898
        %v900 = vrot.slane %v899, 4
        %v901 = vadd.f32 %v899, %v900
        %v902 = vrot.slane %v901, 2
        %v903 = vadd.f32 %v901, %v902
        %v904 = vrot.slane %v903, 1
        %v905 = vadd.f32 %v903, %v904
        %v906 = vrcp.pop %v905
        %v907 = vmul.f32 %v899, %v906
        %v908 = vld [vmem:[%s259] sm:$0xff]
        %v909 = vlaneseq
        %v910 = vshrl.u32 %v909, 7
        %v911 = vsub.s32 0, %v910
        %v912 = vrot.slane %v907, %v911
        %v913 = vmul.f32 %v912, %v908
        %v914 = vld [vmem:[%s259 + $0x10] sm:$0xff]
        %v915 = vlaneseq
        %v916 = vshrl.u32 %v915, 7
        %v917 = vsub.s32 1, %v916
        %v918 = vrot.slane %v907, %v917
        %v919 = vmul.f32 %v918, %v914
        %v920 = vadd.f32 %v913, %v919
        %v921 = vld [vmem:[%s259 + $0x20] sm:$0xff]
        %v922 = vlaneseq
        %v923 = vshrl.u32 %v922, 7
        %v924 = vsub.s32 2, %v923
        %v925 = vrot.slane %v907, %v924
        %v926 = vmul.f32 %v925, %v921
        %v927 = vadd.f32 %v920, %v926
        %v928 = vld [vmem:[%s259 + $0x30] sm:$0xff]
        %v929 = vlaneseq
        %v930 = vshrl.u32 %v929, 7
        %v931 = vsub.s32 3, %v930
        %v932 = vrot.slane %v907, %v931
        %v933 = vmul.f32 %v932, %v928
        %v934 = vadd.f32 %v927, %v933
        %v935 = vld [vmem:[%s259 + $0x40] sm:$0xff]
        %v936 = vlaneseq
        %v937 = vshrl.u32 %v936, 7
        %v938 = vsub.s32 4, %v937
        %v939 = vrot.slane %v907, %v938
        %v940 = vmul.f32 %v939, %v935
        %v941 = vadd.f32 %v934, %v940
        %v942 = vld [vmem:[%s259 + $0x50] sm:$0xff]
        %v943 = vlaneseq
        %v944 = vshrl.u32 %v943, 7
        %v945 = vsub.s32 5, %v944
        %v946 = vrot.slane %v907, %v945
        %v947 = vmul.f32 %v946, %v942
        %v948 = vadd.f32 %v941, %v947
        %v949 = vld [vmem:[%s259 + $0x60] sm:$0xff]
        %v950 = vlaneseq
        %v951 = vshrl.u32 %v950, 7
        %v952 = vsub.s32 6, %v951
        %v953 = vrot.slane %v907, %v952
        %v954 = vmul.f32 %v953, %v949
        %v955 = vadd.f32 %v948, %v954
        %v956 = vlaneseq
        %v957 = vshrl.u32 %v956, 7
        %v958 = vsub.s32 7, %v957
        %v959 = vrot.slane %v907, %v958
        %v960 = vmul.f32 %v959, %v314
        %v961 = vadd.f32 %v955, %v960
        %962 = vst [vmem:[%s288] sm:$0xff] %v961
        %v963 = vld [vmem:[%s259 + $0x8] sm:$0xff]
        %v964 = vld [vmem:[%s259 + $0x18] sm:$0xff]
        %v965 = vld [vmem:[%s259 + $0x28] sm:$0xff]
        %v966 = vld [vmem:[%s259 + $0x38] sm:$0xff]
        %v967 = vld [vmem:[%s259 + $0x48] sm:$0xff]
        %v968 = vld [vmem:[%s259 + $0x58] sm:$0xff]
        %v969 = vld [vmem:[%s259 + $0x68] sm:$0xff]
        %v970 = vld [vmem:[%s259 + $0x78] sm:$0xff]
        %v971 = vld [vmem:[%s250 + $0x8] sm:$0xff]
        %v972 = vmul.f32 %v971, %v319
        %v973 = vrot.slane %v972, 4
        %v974 = vadd.f32 %v972, %v973
        %v975 = vrot.slane %v974, 2
        %v976 = vadd.f32 %v974, %v975
        %v977 = vrot.slane %v976, 1
        %v978 = vadd.f32 %v976, %v977
        %v979 = vadd.f32 %v978, %v331
        %v980 = vlaneseq
        %v981 = vshrl.u32 %v980, 7
        %v982 = vsub.s32 0, %v981
        %v983 = vrot.slane %v979, %v982
        %984 = vmatprep.subr.mxu0 0.0
        %v985 = vand.u32 %v963, 4294901760
        %986 = vmatpush1.msra.mxu0 %v985
        %987 = vmatprep.subr.mxu0 0.0
        %v988 = vand.u32 %v964, 4294901760
        %989 = vmatpush1.msra.mxu0 %v988
        %990 = vmatprep.subr.mxu0 0.0
        %v991 = vand.u32 %v965, 4294901760
        %992 = vmatpush1.msra.mxu0 %v991
        %993 = vmatprep.subr.mxu0 0.0
        %v994 = vand.u32 %v966, 4294901760
        %995 = vmatpush1.msra.mxu0 %v994
        %996 = vmatprep.subr.mxu0 0.0
        %v997 = vand.u32 %v967, 4294901760
        %998 = vmatpush1.msra.mxu0 %v997
        %999 = vmatprep.subr.mxu0 0.0
        %v1000 = vand.u32 %v968, 4294901760
        %1001 = vmatpush1.msra.mxu0 %v1000
        %1002 = vmatprep.subr.mxu0 0.0
        %v1003 = vand.u32 %v969, 4294901760
        %1004 = vmatpush1.msra.mxu0 %v1003
        %1005 = vmatprep.subr.mxu0 0.0
        %v1006 = vand.u32 %v970, 4294901760
        %1007 = vmatpush1.msra.mxu0 %v1006
        %1008 = vmatprep.subr.mxu0 0.0
        %1009 = vmatpush1.msra.mxu0 0.0
        %1010 = vmatprep.subr.mxu0 0.0
        %1011 = vmatpush1.msra.mxu0 0.0
        %1012 = vmatprep.subr.mxu0 0.0
        %1013 = vmatpush1.msra.mxu0 0.0
        %1014 = vmatprep.subr.mxu0 0.0
        %1015 = vmatpush1.msra.mxu0 0.0
        %1016 = vmatprep.subr.mxu0 0.0
        %1017 = vmatpush1.msra.mxu0 0.0
        %1018 = vmatprep.subr.mxu0 0.0
        %1019 = vmatpush1.msra.mxu0 0.0
        %1020 = vmatprep.subr.mxu0 0.0
        %1021 = vmatpush1.msra.mxu0 0.0
        %1022 = vmatprep.subr.mxu0 0.0
        %1023 = vmatpush1.msra.mxu0 0.0
        %1024 = vmatprep.subr.mxu0 0.0
        %1025 = vmatpush1.msra.mxu0 0.0
        %1026 = vmatprep.subr.mxu0 0.0
        %1027 = vmatpush1.msra.mxu0 0.0
        %1028 = vmatprep.subr.mxu0 0.0
        %1029 = vmatpush1.msra.mxu0 0.0
        %1030 = vmatprep.subr.mxu0 0.0
        %1031 = vmatpush1.msra.mxu0 0.0
        %1032 = vmatprep.subr.mxu0 0.0
        %1033 = vmatpush1.msra.mxu0 0.0
        %1034 = vmatprep.subr.mxu0 0.0
        %1035 = vmatpush1.msra.mxu0 0.0
        %1036 = vmatprep.subr.mxu0 0.0
        %1037 = vmatpush1.msra.mxu0 0.0
        %1038 = vmatprep.subr.mxu0 0.0
        %1039 = vmatpush1.msra.mxu0 0.0
        %1040 = vmatprep.subr.mxu0 0.0
        %1041 = vmatpush1.msra.mxu0 0.0
        %1042 = vmatprep.subr.mxu0 0.0
        %1043 = vmatpush1.msra.mxu0 0.0
        %1044 = vmatprep.subr.mxu0 0.0
        %1045 = vmatpush1.msra.mxu0 0.0
        %1046 = vmatprep.subr.mxu0 0.0
        %1047 = vmatpush1.msra.mxu0 0.0
        %1048 = vmatprep.subr.mxu0 0.0
        %1049 = vmatpush1.msra.mxu0 0.0
        %1050 = vmatprep.subr.mxu0 0.0
        %1051 = vmatpush1.msra.mxu0 0.0
        %1052 = vmatprep.subr.mxu0 0.0
        %1053 = vmatpush1.msra.mxu0 0.0
        %1054 = vmatprep.subr.mxu0 0.0
        %1055 = vmatpush1.msra.mxu0 0.0
        %1056 = vmatprep.mubr.f32.mxu0 0.0
        %v1057 = vand.u32 %v340, 4294901760
        %v1058 = vsub.f32 %v340, %v1057
        %v1059 = vand.u32 %v1058, 4294901760
        %v1060 = vsub.f32 %v1058, %v1059
        %v1061 = vand.u32 %v1060, 4294901760
        %1062 = vmatmul.mubr.f32.gmra.mrb[0].mxu0 %v1061
        %v1063 = vpop.f32.mrb[0].mxu0
        %v1064 = vadd.f32 %v983, %v1063
        %v1065 = vpop.f32.mrb[0].mxu0
        %1066 = vdwg.mxu0
        %1067 = vmatprep.subr.mxu0 0.0
        %v1068 = vand.u32 %v963, 4294901760
        %v1069 = vsub.f32 %v963, %v1068
        %v1070 = vand.u32 %v1069, 4294901760
        %v1071 = vsub.f32 %v1069, %v1070
        %v1072 = vand.u32 %v1071, 4294901760
        %1073 = vmatpush1.msra.mxu0 %v1072
        %1074 = vmatprep.subr.mxu0 0.0
        %v1075 = vand.u32 %v964, 4294901760
        %v1076 = vsub.f32 %v964, %v1075
        %v1077 = vand.u32 %v1076, 4294901760
        %v1078 = vsub.f32 %v1076, %v1077
        %v1079 = vand.u32 %v1078, 4294901760
        %1080 = vmatpush1.msra.mxu0 %v1079
        %1081 = vmatprep.subr.mxu0 0.0
        %v1082 = vand.u32 %v965, 4294901760
        %v1083 = vsub.f32 %v965, %v1082
        %v1084 = vand.u32 %v1083, 4294901760
        %v1085 = vsub.f32 %v1083, %v1084
        %v1086 = vand.u32 %v1085, 4294901760
        %1087 = vmatpush1.msra.mxu0 %v1086
        %1088 = vmatprep.subr.mxu0 0.0
        %v1089 = vand.u32 %v966, 4294901760
        %v1090 = vsub.f32 %v966, %v1089
        %v1091 = vand.u32 %v1090, 4294901760
        %v1092 = vsub.f32 %v1090, %v1091
        %v1093 = vand.u32 %v1092, 4294901760
        %1094 = vmatpush1.msra.mxu0 %v1093
        %1095 = vmatprep.subr.mxu0 0.0
        %v1096 = vand.u32 %v967, 4294901760
        %v1097 = vsub.f32 %v967, %v1096
        %v1098 = vand.u32 %v1097, 4294901760
        %v1099 = vsub.f32 %v1097, %v1098
        %v1100 = vand.u32 %v1099, 4294901760
        %1101 = vmatpush1.msra.mxu0 %v1100
        %1102 = vmatprep.subr.mxu0 0.0
        %v1103 = vand.u32 %v968, 4294901760
        %v1104 = vsub.f32 %v968, %v1103
        %v1105 = vand.u32 %v1104, 4294901760
        %v1106 = vsub.f32 %v1104, %v1105
        %v1107 = vand.u32 %v1106, 4294901760
        %1108 = vmatpush1.msra.mxu0 %v1107
        %1109 = vmatprep.subr.mxu0 0.0
        %v1110 = vand.u32 %v969, 4294901760
        %v1111 = vsub.f32 %v969, %v1110
        %v1112 = vand.u32 %v1111, 4294901760
        %v1113 = vsub.f32 %v1111, %v1112
        %v1114 = vand.u32 %v1113, 4294901760
        %1115 = vmatpush1.msra.mxu0 %v1114
        %1116 = vmatprep.subr.mxu0 0.0
        %v1117 = vand.u32 %v970, 4294901760
        %v1118 = vsub.f32 %v970, %v1117
        %v1119 = vand.u32 %v1118, 4294901760
        %v1120 = vsub.f32 %v1118, %v1119
        %v1121 = vand.u32 %v1120, 4294901760
        %1122 = vmatpush1.msra.mxu0 %v1121
        %1123 = vmatprep.subr.mxu0 0.0
        %1124 = vmatpush1.msra.mxu0 0.0
        %1125 = vmatprep.subr.mxu0 0.0
        %1126 = vmatpush1.msra.mxu0 0.0
        %1127 = vmatprep.subr.mxu0 0.0
        %1128 = vmatpush1.msra.mxu0 0.0
        %1129 = vmatprep.subr.mxu0 0.0
        %1130 = vmatpush1.msra.mxu0 0.0
        %1131 = vmatprep.subr.mxu0 0.0
        %1132 = vmatpush1.msra.mxu0 0.0
        %1133 = vmatprep.subr.mxu0 0.0
        %1134 = vmatpush1.msra.mxu0 0.0
        %1135 = vmatprep.subr.mxu0 0.0
        %1136 = vmatpush1.msra.mxu0 0.0
        %1137 = vmatprep.subr.mxu0 0.0
        %1138 = vmatpush1.msra.mxu0 0.0
        %1139 = vmatprep.subr.mxu0 0.0
        %1140 = vmatpush1.msra.mxu0 0.0
        %1141 = vmatprep.subr.mxu0 0.0
        %1142 = vmatpush1.msra.mxu0 0.0
        %1143 = vmatprep.subr.mxu0 0.0
        %1144 = vmatpush1.msra.mxu0 0.0
        %1145 = vmatprep.subr.mxu0 0.0
        %1146 = vmatpush1.msra.mxu0 0.0
        %1147 = vmatprep.subr.mxu0 0.0
        %1148 = vmatpush1.msra.mxu0 0.0
        %1149 = vmatprep.subr.mxu0 0.0
        %1150 = vmatpush1.msra.mxu0 0.0
        %1151 = vmatprep.subr.mxu0 0.0
        %1152 = vmatpush1.msra.mxu0 0.0
        %1153 = vmatprep.subr.mxu0 0.0
        %1154 = vmatpush1.msra.mxu0 0.0
        %1155 = vmatprep.subr.mxu0 0.0
        %1156 = vmatpush1.msra.mxu0 0.0
        %1157 = vmatprep.subr.mxu0 0.0
        %1158 = vmatpush1.msra.mxu0 0.0
        %1159 = vmatprep.subr.mxu0 0.0
        %1160 = vmatpush1.msra.mxu0 0.0
        %1161 = vmatprep.subr.mxu0 0.0
        %1162 = vmatpush1.msra.mxu0 0.0
        %1163 = vmatprep.subr.mxu0 0.0
        %1164 = vmatpush1.msra.mxu0 0.0
        %1165 = vmatprep.subr.mxu0 0.0
        %1166 = vmatpush1.msra.mxu0 0.0
        %1167 = vmatprep.subr.mxu0 0.0
        %1168 = vmatpush1.msra.mxu0 0.0
        %1169 = vmatprep.subr.mxu0 0.0
        %1170 = vmatpush1.msra.mxu0 0.0
        %1171 = vmatprep.mubr.f32.mxu0 0.0
        %v1172 = vand.u32 %v340, 4294901760
        %1173 = vmatmul.mubr.f32.gmra.mrb[0].mxu0 %v1172
        %v1174 = vpop.f32.mrb[0].mxu0
        %v1175 = vadd.f32 %v1064, %v1174
        %v1176 = vpop.f32.mrb[0].mxu0
        %1177 = vdwg.mxu0
        %1178 = vmatprep.subr.mxu0 0.0
        %v1179 = vand.u32 %v963, 4294901760
        %v1180 = vsub.f32 %v963, %v1179
        %1181 = vmatpush1.msra.mxu0 %v1180
        %1182 = vmatprep.subr.mxu0 0.0
        %v1183 = vand.u32 %v964, 4294901760
        %v1184 = vsub.f32 %v964, %v1183
        %1185 = vmatpush1.msra.mxu0 %v1184
        %1186 = vmatprep.subr.mxu0 0.0
        %v1187 = vand.u32 %v965, 4294901760
        %v1188 = vsub.f32 %v965, %v1187
        %1189 = vmatpush1.msra.mxu0 %v1188
        %1190 = vmatprep.subr.mxu0 0.0
        %v1191 = vand.u32 %v966, 4294901760
        %v1192 = vsub.f32 %v966, %v1191
        %1193 = vmatpush1.msra.mxu0 %v1192
        %1194 = vmatprep.subr.mxu0 0.0
        %v1195 = vand.u32 %v967, 4294901760
        %v1196 = vsub.f32 %v967, %v1195
        %1197 = vmatpush1.msra.mxu0 %v1196
        %1198 = vmatprep.subr.mxu0 0.0
        %v1199 = vand.u32 %v968, 4294901760
        %v1200 = vsub.f32 %v968, %v1199
        %1201 = vmatpush1.msra.mxu0 %v1200
        %1202 = vmatprep.subr.mxu0 0.0
        %v1203 = vand.u32 %v969, 4294901760
        %v1204 = vsub.f32 %v969, %v1203
        %1205 = vmatpush1.msra.mxu0 %v1204
        %1206 = vmatprep.subr.mxu0 0.0
        %v1207 = vand.u32 %v970, 4294901760
        %v1208 = vsub.f32 %v970, %v1207
        %1209 = vmatpush1.msra.mxu0 %v1208
        %1210 = vmatprep.subr.mxu0 0.0
        %1211 = vmatpush1.msra.mxu0 0.0
        %1212 = vmatprep.subr.mxu0 0.0
        %1213 = vmatpush1.msra.mxu0 0.0
        %1214 = vmatprep.subr.mxu0 0.0
        %1215 = vmatpush1.msra.mxu0 0.0
        %1216 = vmatprep.subr.mxu0 0.0
        %1217 = vmatpush1.msra.mxu0 0.0
        %1218 = vmatprep.subr.mxu0 0.0
        %1219 = vmatpush1.msra.mxu0 0.0
        %1220 = vmatprep.subr.mxu0 0.0
        %1221 = vmatpush1.msra.mxu0 0.0
        %1222 = vmatprep.subr.mxu0 0.0
        %1223 = vmatpush1.msra.mxu0 0.0
        %1224 = vmatprep.subr.mxu0 0.0
        %1225 = vmatpush1.msra.mxu0 0.0
        %1226 = vmatprep.subr.mxu0 0.0
        %1227 = vmatpush1.msra.mxu0 0.0
        %1228 = vmatprep.subr.mxu0 0.0
        %1229 = vmatpush1.msra.mxu0 0.0
        %1230 = vmatprep.subr.mxu0 0.0
        %1231 = vmatpush1.msra.mxu0 0.0
        %1232 = vmatprep.subr.mxu0 0.0
        %1233 = vmatpush1.msra.mxu0 0.0
        %1234 = vmatprep.subr.mxu0 0.0
        %1235 = vmatpush1.msra.mxu0 0.0
        %1236 = vmatprep.subr.mxu0 0.0
        %1237 = vmatpush1.msra.mxu0 0.0
        %1238 = vmatprep.subr.mxu0 0.0
        %1239 = vmatpush1.msra.mxu0 0.0
        %1240 = vmatprep.subr.mxu0 0.0
        %1241 = vmatpush1.msra.mxu0 0.0
        %1242 = vmatprep.subr.mxu0 0.0
        %1243 = vmatpush1.msra.mxu0 0.0
        %1244 = vmatprep.subr.mxu0 0.0
        %1245 = vmatpush1.msra.mxu0 0.0
        %1246 = vmatprep.subr.mxu0 0.0
        %1247 = vmatpush1.msra.mxu0 0.0
        %1248 = vmatprep.subr.mxu0 0.0
        %1249 = vmatpush1.msra.mxu0 0.0
        %1250 = vmatprep.subr.mxu0 0.0
        %1251 = vmatpush1.msra.mxu0 0.0
        %1252 = vmatprep.subr.mxu0 0.0
        %1253 = vmatpush1.msra.mxu0 0.0
        %1254 = vmatprep.subr.mxu0 0.0
        %1255 = vmatpush1.msra.mxu0 0.0
        %1256 = vmatprep.subr.mxu0 0.0
        %1257 = vmatpush1.msra.mxu0 0.0
        %1258 = vmatprep.mubr.f32.mxu0 0.0
        %v1259 = vand.u32 %v340, 4294901760
        %v1260 = vsub.f32 %v340, %v1259
        %1261 = vmatmul.mubr.f32.gmra.mrb[0].mxu0 %v1260
        %v1262 = vpop.f32.mrb[0].mxu0
        %v1263 = vadd.f32 %v1175, %v1262
        %v1264 = vpop.f32.mrb[0].mxu0
        %1265 = vdwg.mxu0
        %1266 = vmatprep.subr.mxu0 0.0
        %v1267 = vand.u32 %v963, 4294901760
        %1268 = vmatpush1.msra.mxu0 %v1267
        %1269 = vmatprep.subr.mxu0 0.0
        %v1270 = vand.u32 %v964, 4294901760
        %1271 = vmatpush1.msra.mxu0 %v1270
        %1272 = vmatprep.subr.mxu0 0.0
        %v1273 = vand.u32 %v965, 4294901760
        %1274 = vmatpush1.msra.mxu0 %v1273
        %1275 = vmatprep.subr.mxu0 0.0
        %v1276 = vand.u32 %v966, 4294901760
        %1277 = vmatpush1.msra.mxu0 %v1276
        %1278 = vmatprep.subr.mxu0 0.0
        %v1279 = vand.u32 %v967, 4294901760
        %1280 = vmatpush1.msra.mxu0 %v1279
        %1281 = vmatprep.subr.mxu0 0.0
        %v1282 = vand.u32 %v968, 4294901760
        %1283 = vmatpush1.msra.mxu0 %v1282
        %1284 = vmatprep.subr.mxu0 0.0
        %v1285 = vand.u32 %v969, 4294901760
        %1286 = vmatpush1.msra.mxu0 %v1285
        %1287 = vmatprep.subr.mxu0 0.0
        %v1288 = vand.u32 %v970, 4294901760
        %1289 = vmatpush1.msra.mxu0 %v1288
        %1290 = vmatprep.subr.mxu0 0.0
        %1291 = vmatpush1.msra.mxu0 0.0
        %1292 = vmatprep.subr.mxu0 0.0
        %1293 = vmatpush1.msra.mxu0 0.0
        %1294 = vmatprep.subr.mxu0 0.0
        %1295 = vmatpush1.msra.mxu0 0.0
        %1296 = vmatprep.subr.mxu0 0.0
        %1297 = vmatpush1.msra.mxu0 0.0
        %1298 = vmatprep.subr.mxu0 0.0
        %1299 = vmatpush1.msra.mxu0 0.0
        %1300 = vmatprep.subr.mxu0 0.0
        %1301 = vmatpush1.msra.mxu0 0.0
        %1302 = vmatprep.subr.mxu0 0.0
        %1303 = vmatpush1.msra.mxu0 0.0
        %1304 = vmatprep.subr.mxu0 0.0
        %1305 = vmatpush1.msra.mxu0 0.0
        %1306 = vmatprep.subr.mxu0 0.0
        %1307 = vmatpush1.msra.mxu0 0.0
        %1308 = vmatprep.subr.mxu0 0.0
        %1309 = vmatpush1.msra.mxu0 0.0
        %1310 = vmatprep.subr.mxu0 0.0
        %1311 = vmatpush1.msra.mxu0 0.0
        %1312 = vmatprep.subr.mxu0 0.0
        %1313 = vmatpush1.msra.mxu0 0.0
        %1314 = vmatprep.subr.mxu0 0.0
        %1315 = vmatpush1.msra.mxu0 0.0
        %1316 = vmatprep.subr.mxu0 0.0
        %1317 = vmatpush1.msra.mxu0 0.0
        %1318 = vmatprep.subr.mxu0 0.0
        %1319 = vmatpush1.msra.mxu0 0.0
        %1320 = vmatprep.subr.mxu0 0.0
        %1321 = vmatpush1.msra.mxu0 0.0
        %1322 = vmatprep.subr.mxu0 0.0
        %1323 = vmatpush1.msra.mxu0 0.0
        %1324 = vmatprep.subr.mxu0 0.0
        %1325 = vmatpush1.msra.mxu0 0.0
        %1326 = vmatprep.subr.mxu0 0.0
        %1327 = vmatpush1.msra.mxu0 0.0
        %1328 = vmatprep.subr.mxu0 0.0
        %1329 = vmatpush1.msra.mxu0 0.0
        %1330 = vmatprep.subr.mxu0 0.0
        %1331 = vmatpush1.msra.mxu0 0.0
        %1332 = vmatprep.subr.mxu0 0.0
        %1333 = vmatpush1.msra.mxu0 0.0
        %1334 = vmatprep.subr.mxu0 0.0
        %1335 = vmatpush1.msra.mxu0 0.0
        %1336 = vmatprep.subr.mxu0 0.0
        %1337 = vmatpush1.msra.mxu0 0.0
        %1338 = vmatprep.mubr.f32.mxu0 0.0
        %v1339 = vand.u32 %v340, 4294901760
        %v1340 = vsub.f32 %v340, %v1339
        %v1341 = vand.u32 %v1340, 4294901760
        %1342 = vmatmul.mubr.f32.gmra.mrb[0].mxu0 %v1341
        %v1343 = vpop.f32.mrb[0].mxu0
        %v1344 = vadd.f32 %v1263, %v1343
        %v1345 = vpop.f32.mrb[0].mxu0
        %1346 = vdwg.mxu0
        %1347 = vmatprep.subr.mxu0 0.0
        %v1348 = vand.u32 %v963, 4294901760
        %v1349 = vsub.f32 %v963, %v1348
        %v1350 = vand.u32 %v1349, 4294901760
        %1351 = vmatpush1.msra.mxu0 %v1350
        %1352 = vmatprep.subr.mxu0 0.0
        %v1353 = vand.u32 %v964, 4294901760
        %v1354 = vsub.f32 %v964, %v1353
        %v1355 = vand.u32 %v1354, 4294901760
        %1356 = vmatpush1.msra.mxu0 %v1355
        %1357 = vmatprep.subr.mxu0 0.0
        %v1358 = vand.u32 %v965, 4294901760
        %v1359 = vsub.f32 %v965, %v1358
        %v1360 = vand.u32 %v1359, 4294901760
        %1361 = vmatpush1.msra.mxu0 %v1360
        %1362 = vmatprep.subr.mxu0 0.0
        %v1363 = vand.u32 %v966, 4294901760
        %v1364 = vsub.f32 %v966, %v1363
        %v1365 = vand.u32 %v1364, 4294901760
        %1366 = vmatpush1.msra.mxu0 %v1365
        %1367 = vmatprep.subr.mxu0 0.0
        %v1368 = vand.u32 %v967, 4294901760
        %v1369 = vsub.f32 %v967, %v1368
        %v1370 = vand.u32 %v1369, 4294901760
        %1371 = vmatpush1.msra.mxu0 %v1370
        %1372 = vmatprep.subr.mxu0 0.0
        %v1373 = vand.u32 %v968, 4294901760
        %v1374 = vsub.f32 %v968, %v1373
        %v1375 = vand.u32 %v1374, 4294901760
        %1376 = vmatpush1.msra.mxu0 %v1375
        %1377 = vmatprep.subr.mxu0 0.0
        %v1378 = vand.u32 %v969, 4294901760
        %v1379 = vsub.f32 %v969, %v1378
        %v1380 = vand.u32 %v1379, 4294901760
        %1381 = vmatpush1.msra.mxu0 %v1380
        %1382 = vmatprep.subr.mxu0 0.0
        %v1383 = vand.u32 %v970, 4294901760
        %v1384 = vsub.f32 %v970, %v1383
        %v1385 = vand.u32 %v1384, 4294901760
        %1386 = vmatpush1.msra.mxu0 %v1385
        %1387 = vmatprep.subr.mxu0 0.0
        %1388 = vmatpush1.msra.mxu0 0.0
        %1389 = vmatprep.subr.mxu0 0.0
        %1390 = vmatpush1.msra.mxu0 0.0
        %1391 = vmatprep.subr.mxu0 0.0
        %1392 = vmatpush1.msra.mxu0 0.0
        %1393 = vmatprep.subr.mxu0 0.0
        %1394 = vmatpush1.msra.mxu0 0.0
        %1395 = vmatprep.subr.mxu0 0.0
        %1396 = vmatpush1.msra.mxu0 0.0
        %1397 = vmatprep.subr.mxu0 0.0
        %1398 = vmatpush1.msra.mxu0 0.0
        %1399 = vmatprep.subr.mxu0 0.0
        %1400 = vmatpush1.msra.mxu0 0.0
        %1401 = vmatprep.subr.mxu0 0.0
        %1402 = vmatpush1.msra.mxu0 0.0
        %1403 = vmatprep.subr.mxu0 0.0
        %1404 = vmatpush1.msra.mxu0 0.0
        %1405 = vmatprep.subr.mxu0 0.0
        %1406 = vmatpush1.msra.mxu0 0.0
        %1407 = vmatprep.subr.mxu0 0.0
        %1408 = vmatpush1.msra.mxu0 0.0
        %1409 = vmatprep.subr.mxu0 0.0
        %1410 = vmatpush1.msra.mxu0 0.0
        %1411 = vmatprep.subr.mxu0 0.0
        %1412 = vmatpush1.msra.mxu0 0.0
        %1413 = vmatprep.subr.mxu0 0.0
        %1414 = vmatpush1.msra.mxu0 0.0
        %1415 = vmatprep.subr.mxu0 0.0
        %1416 = vmatpush1.msra.mxu0 0.0
        %1417 = vmatprep.subr.mxu0 0.0
        %1418 = vmatpush1.msra.mxu0 0.0
        %1419 = vmatprep.subr.mxu0 0.0
        %1420 = vmatpush1.msra.mxu0 0.0
        %1421 = vmatprep.subr.mxu0 0.0
        %1422 = vmatpush1.msra.mxu0 0.0
        %1423 = vmatprep.subr.mxu0 0.0
        %1424 = vmatpush1.msra.mxu0 0.0
        %1425 = vmatprep.subr.mxu0 0.0
        %1426 = vmatpush1.msra.mxu0 0.0
        %1427 = vmatprep.subr.mxu0 0.0
        %1428 = vmatpush1.msra.mxu0 0.0
        %1429 = vmatprep.subr.mxu0 0.0
        %1430 = vmatpush1.msra.mxu0 0.0
        %1431 = vmatprep.subr.mxu0 0.0
        %1432 = vmatpush1.msra.mxu0 0.0
        %1433 = vmatprep.subr.mxu0 0.0
        %1434 = vmatpush1.msra.mxu0 0.0
        %1435 = vmatprep.mubr.f32.mxu0 0.0
        %v1436 = vand.u32 %v340, 4294901760
        %1437 = vmatmul.mubr.f32.gmra.mrb[0].mxu0 %v1436
        %v1438 = vpop.f32.mrb[0].mxu0
        %v1439 = vadd.f32 %v1344, %v1438
        %v1440 = vpop.f32.mrb[0].mxu0
        %1441 = vdwg.mxu0
        %1442 = vmatprep.subr.mxu0 0.0
        %v1443 = vand.u32 %v963, 4294901760
        %1444 = vmatpush1.msra.mxu0 %v1443
        %1445 = vmatprep.subr.mxu0 0.0
        %v1446 = vand.u32 %v964, 4294901760
        %1447 = vmatpush1.msra.mxu0 %v1446
        %1448 = vmatprep.subr.mxu0 0.0
        %v1449 = vand.u32 %v965, 4294901760
        %1450 = vmatpush1.msra.mxu0 %v1449
        %1451 = vmatprep.subr.mxu0 0.0
        %v1452 = vand.u32 %v966, 4294901760
        %1453 = vmatpush1.msra.mxu0 %v1452
        %1454 = vmatprep.subr.mxu0 0.0
        %v1455 = vand.u32 %v967, 4294901760
        %1456 = vmatpush1.msra.mxu0 %v1455
        %1457 = vmatprep.subr.mxu0 0.0
        %v1458 = vand.u32 %v968, 4294901760
        %1459 = vmatpush1.msra.mxu0 %v1458
        %1460 = vmatprep.subr.mxu0 0.0
        %v1461 = vand.u32 %v969, 4294901760
        %1462 = vmatpush1.msra.mxu0 %v1461
        %1463 = vmatprep.subr.mxu0 0.0
        %v1464 = vand.u32 %v970, 4294901760
        %1465 = vmatpush1.msra.mxu0 %v1464
        %1466 = vmatprep.subr.mxu0 0.0
        %1467 = vmatpush1.msra.mxu0 0.0
        %1468 = vmatprep.subr.mxu0 0.0
        %1469 = vmatpush1.msra.mxu0 0.0
        %1470 = vmatprep.subr.mxu0 0.0
        %1471 = vmatpush1.msra.mxu0 0.0
        %1472 = vmatprep.subr.mxu0 0.0
        %1473 = vmatpush1.msra.mxu0 0.0
        %1474 = vmatprep.subr.mxu0 0.0
        %1475 = vmatpush1.msra.mxu0 0.0
        %1476 = vmatprep.subr.mxu0 0.0
        %1477 = vmatpush1.msra.mxu0 0.0
        %1478 = vmatprep.subr.mxu0 0.0
        %1479 = vmatpush1.msra.mxu0 0.0
        %1480 = vmatprep.subr.mxu0 0.0
        %1481 = vmatpush1.msra.mxu0 0.0
        %1482 = vmatprep.subr.mxu0 0.0
        %1483 = vmatpush1.msra.mxu0 0.0
        %1484 = vmatprep.subr.mxu0 0.0
        %1485 = vmatpush1.msra.mxu0 0.0
        %1486 = vmatprep.subr.mxu0 0.0
        %1487 = vmatpush1.msra.mxu0 0.0
        %1488 = vmatprep.subr.mxu0 0.0
        %1489 = vmatpush1.msra.mxu0 0.0
        %1490 = vmatprep.subr.mxu0 0.0
        %1491 = vmatpush1.msra.mxu0 0.0
        %1492 = vmatprep.subr.mxu0 0.0
        %1493 = vmatpush1.msra.mxu0 0.0
        %1494 = vmatprep.subr.mxu0 0.0
        %1495 = vmatpush1.msra.mxu0 0.0
        %1496 = vmatprep.subr.mxu0 0.0
        %1497 = vmatpush1.msra.mxu0 0.0
        %1498 = vmatprep.subr.mxu0 0.0
        %1499 = vmatpush1.msra.mxu0 0.0
        %1500 = vmatprep.subr.mxu0 0.0
        %1501 = vmatpush1.msra.mxu0 0.0
        %1502 = vmatprep.subr.mxu0 0.0
        %1503 = vmatpush1.msra.mxu0 0.0
        %1504 = vmatprep.subr.mxu0 0.0
        %1505 = vmatpush1.msra.mxu0 0.0
        %1506 = vmatprep.subr.mxu0 0.0
        %1507 = vmatpush1.msra.mxu0 0.0
        %1508 = vmatprep.subr.mxu0 0.0
        %1509 = vmatpush1.msra.mxu0 0.0
        %1510 = vmatprep.subr.mxu0 0.0
        %1511 = vmatpush1.msra.mxu0 0.0
        %1512 = vmatprep.subr.mxu0 0.0
        %1513 = vmatpush1.msra.mxu0 0.0
        %1514 = vmatprep.mubr.f32.mxu0 0.0
        %v1515 = vand.u32 %v340, 4294901760
        %1516 = vmatmul.mubr.f32.gmra.mrb[0].mxu0 %v1515
        %v1517 = vpop.f32.mrb[0].mxu0
        %v1518 = vadd.f32 %v1439, %v1517
        %v1519 = vpop.f32.mrb[0].mxu0
        %1520 = vdwg.mxu0
        %vm1521 = vcmp.gt.f32.partialorder %v1518, 0.0
        %v1522 = vmul.f32 %v1518, 0.1
        %v1523 = vsel %vm1521, %v1518, %v1522
        %s1524 = sadd.s32 %s882, 128
        %v1525 = vstv %s1524
        %v1526 = vadd.s32 %v1525, %v884
        %vm1527 = vcmp.lt.s32.totalorder %v1526, 384
        %v1528 = vsel %vm1527, 1, 0
        %vm1529 = vcmp.eq.s32.totalorder %v1528, 1
        %v1530 = vsel %vm1529, %v1523, 0.0
        %v1531 = vrot.slane %v1530, 4
        %v1532 = vmax.f32 %v1530, %v1531
        %v1533 = vrot.slane %v1532, 2
        %v1534 = vmax.f32 %v1532, %v1533
        %v1535 = vrot.slane %v1534, 1
        %v1536 = vmax.f32 %v1534, %v1535
        %v1537 = vsub.f32 %v1530, %v1536
        %v1538 = vmul.f32 %v1537, 1.442695
        %v1539 = vpow.pop %v1538
        %v1540 = vrot.slane %v1539, 4
        %v1541 = vadd.f32 %v1539, %v1540
        %v1542 = vrot.slane %v1541, 2
        %v1543 = vadd.f32 %v1541, %v1542
        %v1544 = vrot.slane %v1543, 1
        %v1545 = vadd.f32 %v1543, %v1544
        %v1546 = vrcp.pop %v1545
        %v1547 = vmul.f32 %v1539, %v1546
        %v1548 = vld [vmem:[%s259 + $0x8] sm:$0xff]
        %v1549 = vlaneseq
        %v1550 = vshrl.u32 %v1549, 7
        %v1551 = vsub.s32 0, %v1550
        %v1552 = vrot.slane %v1547, %v1551
        %v1553 = vmul.f32 %v1552, %v1548
        %v1554 = vld [vmem:[%s259 + $0x18] sm:$0xff]
        %v1555 = vlaneseq
        %v1556 = vshrl.u32 %v1555, 7
        %v1557 = vsub.s32 1, %v1556
        %v1558 = vrot.slane %v1547, %v1557
        %v1559 = vmul.f32 %v1558, %v1554
        %v1560 = vadd.f32 %v1553, %v1559
        %v1561 = vld [vmem:[%s259 + $0x28] sm:$0xff]
        %v1562 = vlaneseq
        %v1563 = vshrl.u32 %v1562, 7
        %v1564 = vsub.s32 2, %v1563
        %v1565 = vrot.slane %v1547, %v1564
        %v1566 = vmul.f32 %v1565, %v1561
        %v1567 = vadd.f32 %v1560, %v1566
        %v1568 = vld [vmem:[%s259 + $0x38] sm:$0xff]
        %v1569 = vlaneseq
        %v1570 = vshrl.u32 %v1569, 7
        %v1571 = vsub.s32 3, %v1570
        %v1572 = vrot.slane %v1547, %v1571
        %v1573 = vmul.f32 %v1572, %v1568
        %v1574 = vadd.f32 %v1567, %v1573
        %v1575 = vld [vmem:[%s259 + $0x48] sm:$0xff]
        %v1576 = vlaneseq
        %v1577 = vshrl.u32 %v1576, 7
        %v1578 = vsub.s32 4, %v1577
        %v1579 = vrot.slane %v1547, %v1578
        %v1580 = vmul.f32 %v1579, %v1575
        %v1581 = vadd.f32 %v1574, %v1580
        %v1582 = vld [vmem:[%s259 + $0x58] sm:$0xff]
        %v1583 = vlaneseq
        %v1584 = vshrl.u32 %v1583, 7
        %v1585 = vsub.s32 5, %v1584
        %v1586 = vrot.slane %v1547, %v1585
        %v1587 = vmul.f32 %v1586, %v1582
        %v1588 = vadd.f32 %v1581, %v1587
        %v1589 = vld [vmem:[%s259 + $0x68] sm:$0xff]
        %v1590 = vlaneseq
        %v1591 = vshrl.u32 %v1590, 7
        %v1592 = vsub.s32 6, %v1591
        %v1593 = vrot.slane %v1547, %v1592
        %v1594 = vmul.f32 %v1593, %v1589
        %v1595 = vadd.f32 %v1588, %v1594
        %v1596 = vlaneseq
        %v1597 = vshrl.u32 %v1596, 7
        %v1598 = vsub.s32 7, %v1597
        %v1599 = vrot.slane %v1547, %v1598
        %v1600 = vmul.f32 %v1599, %v970
        %v1601 = vadd.f32 %v1595, %v1600
        %1602 = vst [vmem:[%s288 + $0x8] sm:$0xff] %v1601
        %s1603 = sand.u32 %s144, 1
        %s1604 = scalar_lea.sflag [#allocation4], %s1603
        %s1605 = sand.u32 %s144, 1
        %s1606 = smul.addr %s1605, 16
        %s1607 = scalar_lea.vmem [#allocation7], %s1606
        // Predicated region
        $region45: #{tpu_custom_call.1} parent=35 // pred_check
          %p1608 = pneg %p154
        $region46: #{tpu_custom_call.1} parent=35 // pred_check_branch
          %1610 = sbr.rel (%p1608) target = $region48
        $region47: #{tpu_custom_call.1} parent=35 // pred_region
          %s1611 = smul.u32 2, %s29
          %s1612 = ssub.s32 3, %s1611
          %p1613 = scmp.lt.s32.totalorder %s1612, 2
          %s1614 = scalar_select %p1613, %s1612, 2
          %s1615 = smul.u32 128, %s1614
          %s1617 = ssub.s32 256, %s1615
          %1618 = vsyncadd %s1604, %s1617
          %p1619 = scmp.ne.s32.totalorder 0, %s1615
          %s1620 = smul.addr %s28, 3
          %s1621 = sadd.s32 %s1611, %s1620
          %s1622 = smul.addr %s1621, 128
          %s1623 = scalar_lea.hbm %s4, %s1622
          %s1624 = smul.u32 %s1614, 8
          %s1625 = sshll.u32 %s1624, 4
          %s1626 = sshll.u32 %s1607, 4
          %s1627 = int_to_ptr.vmem [resolvable:$true] %s1626
          %1629 = dma.vmem_to_hbm [thread:$0]  (%p1619), %s1627, %s1625, %s1623, %s1604
        $region48: #{tpu_custom_call.1} parent=35 // pred_fallthru
          _
      $region36: #{tpu_custom_call.1} parent=5 // pred_fallthru
        _
      %p1630 = scmp.le.s32.totalorder 2, %s19
      // Predicated region
      $region49: #{tpu_custom_call.1} parent=5 // pred_check
        %p1631 = pneg %p1630
      $region50: #{tpu_custom_call.1} parent=5 // pred_check_branch
        %1633 = sbr.rel (%p1631) target = $region52
      $region51: #{tpu_custom_call.1} parent=5 // pred_region
        %s1634 = ssub.s32 %s19, 2
        // Predicated region
        $region53: #{tpu_custom_call.1} parent=51 // pred_check
          %p1635 = pneg %p160
        $region54: #{tpu_custom_call.1} parent=51 // pred_check_branch
          %1637 = sbr.rel (%p1635) target = $region56
        $region55: #{tpu_custom_call.1} parent=51 // pred_region
          %s1638 = sand.u32 %s145, 1
          %s1639 = scalar_lea.sflag [#allocation4], %s1638
          %s1640 = sand.u32 %s145, 1
          %s1641 = smul.addr %s1640, 16
          %s1642 = scalar_lea.vmem [#allocation7], %s1641
          %1643 = dma.done %s1639, 256
        $region56: #{tpu_custom_call.1} parent=51 // pred_fallthru
          _
      $region52: #{tpu_custom_call.1} parent=5 // pred_fallthru
        _
    $region6: #{tpu_custom_call.1} parent=1 // loop_footer
      %s23 = sadd.s32 1, %s19
    $region7: #{tpu_custom_call.1} parent=1 // loop_footer_branch
      %18 = sbr.rel target = $region3
    $region8: #{tpu_custom_call.1} parent=1 // loop_exit
      _
    %1644 = vsyncpa [#allocation3], 1
    %s1645 = scalar_lea.sflag [#allocation3], 1
    %1646 = vsyncpa %s1645, 1
    %1647 = vsyncpa [#allocation6], 1
    %s1648 = scalar_lea.sflag [#allocation6], 1
    %1649 = vsyncpa %s1648, 1
    %1650 = vsyncpa [#allocation4], 1
    %s1651 = scalar_lea.sflag [#allocation4], 1
    %1652 = vsyncpa %s1651, 1

</llo_original>
